<compile_context>
chip_gen: v7x
topology: tpu7x:2x2x1
jax: 0.10.0
libtpu: 0.0.40
codegen_flags: <defaults>
</compile_context>

<pallas_src>
import functools

import jax
import jax.numpy as jnp
from jax.experimental import pallas as pl
from jax.experimental.pallas import tpu as pltpu

LN_EPS = 1e-5  # nn.LayerNorm default


def _patch_embed_kernel(x_ref, w_ref, b_ref, g_ref, beta_ref, o_ref, im_ref, *,
                        hidden):
    # x_ref:    (C, R, P, Wp, P)    R patch-rows of one image (batch squeezed)
    # w_ref:    (K, Hd)             conv weight, K = C*P*P (c, ph, pw order),
    #                               hidden padded to Hd
    # b_ref:    (1, Hd)             conv bias        (zero-padded)
    # g_ref:    (1, Hd)             LayerNorm weight (zero-padded)
    # beta_ref: (1, Hd)             LayerNorm bias   (zero-padded)
    # o_ref:    (T, Hd)             T = R*Wp tokens of this block
    # im_ref:   (T, K)              VMEM im2col staging scratch
    C, R, P, Wp, _ = x_ref.shape
    T, Hd = o_ref.shape

    # --- Stage im2col: token (r*Wp + wp), feature (c*P*P + ph*P + pw). ---
    # Each copy is a contiguous (Wp, P) tile of x placed at a static offset.
    for r in range(R):
        row0 = r * Wp
        for c in range(C):
            for ph in range(P):
                col0 = (c * P + ph) * P
                im_ref[row0:row0 + Wp, col0:col0 + P] = x_ref[c, r, ph]

    # --- Single large matmul: (T, K) @ (K, Hd), f32 accumulation on MXU. ---
    y = jnp.dot(im_ref[...], w_ref[...], preferred_element_type=jnp.float32)
    y = y + b_ref[...].astype(jnp.float32)            # pad lanes stay exactly 0

    # --- LayerNorm over the TRUE `hidden` features. ---
    inv_h = jnp.float32(1.0 / hidden)
    mean = jnp.sum(y, axis=-1, keepdims=True) * inv_h  # pad lanes contribute 0
    centered = y - mean
    if hidden != Hd:
        lane_ok = jax.lax.broadcasted_iota(jnp.int32, (T, Hd), 1) < hidden
        centered = jnp.where(lane_ok, centered, jnp.float32(0.0))
    var = jnp.sum(centered * centered, axis=-1, keepdims=True) * inv_h
    out = centered * jax.lax.rsqrt(var + jnp.float32(LN_EPS))
    out = out * g_ref[...].astype(jnp.float32) + beta_ref[...].astype(jnp.float32)

    o_ref[...] = out.astype(o_ref.dtype)


@functools.partial(jax.jit, static_argnames=("patch_size",))
def mamba_patch_embedding(x, conv_w, conv_b, ln_w, ln_b, *, patch_size):
    """x: (B, C, H, W). Returns ((B, N, hidden), (Hp, Wp))."""
    B, C, H, W = x.shape
    P = patch_size
    hidden = conv_w.shape[0]
    Hp, Wp = H // P, W // P
    N = Hp * Wp
    K = C * P * P

    # Conv2d with stride=P drops any spatial remainder.
    if H != Hp * P or W != Wp * P:
        x = x[:, :, :Hp * P, :Wp * P]

    # Free (metadata-only) reshape: no HBM transpose pass.
    x6 = x.reshape(B, C, Hp, P, Wp, P)

    # Pad hidden to a lane-dense multiple of 128 (zeros; sliced off after).
    hidden_p = max(128, ((hidden + 127) // 128) * 128)
    pad = hidden_p - hidden

    # Conv weight (hidden, C, Ph, Pw) -> (K, hidden) with K in (c, ph, pw)
    # order, matching the kernel's im2col layout (tiny tensor, done once).
    w_r = jnp.transpose(conv_w, (1, 2, 3, 0)).reshape(K, hidden)
    b_r = conv_b.reshape(1, hidden)
    g_r = ln_w.reshape(1, hidden)
    be_r = ln_b.reshape(1, hidden)
    if pad:
        w_r = jnp.pad(w_r, ((0, 0), (0, pad)))
        b_r = jnp.pad(b_r, ((0, 0), (0, pad)))
        g_r = jnp.pad(g_r, ((0, 0), (0, pad)))
        be_r = jnp.pad(be_r, ((0, 0), (0, pad)))

    # Patch-rows per grid step: largest divisor of Hp with <= 1024 tokens/step
    # whose token count keeps the output block (8,128)-legal.  Fallback: whole
    # image per step (block == full dims, always legal).
    R = Hp
    for cand in range(Hp, 0, -1):
        if Hp % cand == 0 and cand * Wp <= 1024 and (cand * Wp) % 8 == 0:
            R = cand
            break
    tokens = R * Wp
    grid = (B, Hp // R)

    # Explicit VMEM budget from the actual block footprint (double-buffered
    # I/O + resident weight + im2col scratch), clamped for v7x's 64 MiB VMEM.
    x_elem = jnp.dtype(x.dtype).itemsize
    w_elem = jnp.dtype(w_r.dtype).itemsize
    x_blk = tokens * K * x_elem                # == C*R*P*Wp*P
    o_blk = tokens * hidden_p * x_elem
    w_bytes = K * hidden_p * w_elem
    im_bytes = tokens * K * x_elem
    need = 3 * x_blk + 3 * o_blk + 2 * w_bytes + im_bytes + (2 << 20)
    vmem_limit = int(min(max(need, 16 << 20), 48 << 20))

    kernel = functools.partial(_patch_embed_kernel, hidden=hidden)

    out_p = pl.pallas_call(
        kernel,
        out_shape=jax.ShapeDtypeStruct((B, N, hidden_p), x.dtype),
        grid_spec=pltpu.PrefetchScalarGridSpec(
            num_scalar_prefetch=0,
            grid=grid,
            in_specs=[
                # x6 block: (1[B], C, R, P, Wp, P); last two dims are full dims.
                pl.BlockSpec((None, C, R, P, Wp, P),
                             lambda b, rb: (b, 0, rb, 0, 0, 0)),
                # Resident weight + per-feature vectors (constant block index).
                pl.BlockSpec((K, hidden_p), lambda b, rb: (0, 0)),
                pl.BlockSpec((1, hidden_p), lambda b, rb: (0, 0)),
                pl.BlockSpec((1, hidden_p), lambda b, rb: (0, 0)),
                pl.BlockSpec((1, hidden_p), lambda b, rb: (0, 0)),
            ],
            # Token-major, lane-dense output block: (tokens, hidden_p).
            out_specs=pl.BlockSpec((None, tokens, hidden_p),
                                   lambda b, rb: (b, rb, 0)),
            scratch_shapes=[pltpu.VMEM((tokens, K), x.dtype)],
        ),
        compiler_params=pltpu.CompilerParams(
            dimension_semantics=("parallel", "parallel"),
            vmem_limit_bytes=vmem_limit,
        ),
    )(x6, w_r, b_r, g_r, be_r)

    # Slice off hidden padding; output is already (B, N, hidden) token-major.
    out = out_p if pad == 0 else out_p[..., :hidden]
    # TODO(synk): optionally emit bf16 output to halve HBM write traffic if the
    # downstream consumer tolerates it (kept input dtype to match the module).
    return out, (Hp, Wp)


def _reference(x, conv_w, conv_b, ln_w, ln_b, patch_size):
    """Plain-JAX reference mirroring the PyTorch forward."""
    P = patch_size
    hidden = conv_w.shape[0]
    y = jax.lax.conv_general_dilated(
        x, conv_w, window_strides=(P, P), padding="VALID",
        dimension_numbers=("NCHW", "OIHW", "NCHW"),
        precision=jax.lax.Precision.HIGHEST,
    ) + conv_b.reshape(1, hidden, 1, 1)
    Bn, Hd, Hp, Wp = y.shape
    y = y.reshape(Bn, Hd, Hp * Wp).transpose(0, 2, 1)  # (B, N, hidden)
    mean = jnp.mean(y, axis=-1, keepdims=True)
    var = jnp.mean((y - mean) ** 2, axis=-1, keepdims=True)
    yn = (y - mean) / jnp.sqrt(var + LN_EPS)
    return yn * ln_w + ln_b, (Hp, Wp)


if __name__ == "__main__":
    # Small config: batch=2, channels=4, spatial=16, patch=4, hidden=32
    B, C, H, W = 2, 4, 16, 16
    P = 4
    hidden = 32

    key = jax.random.PRNGKey(0)
    kx, kw, kb, kg, kbe = jax.random.split(key, 5)

    x = jax.random.normal(kx, (B, C, H, W), dtype=jnp.float32)
    # Deterministic synthetic parameters (not a checkpoint load).
    fan_in = C * P * P
    bound = 1.0 / (fan_in ** 0.5)
    conv_w = jax.random.uniform(kw, (hidden, C, P, P), jnp.float32, -bound, bound)
    conv_b = jax.random.uniform(kb, (hidden,), jnp.float32, -bound, bound)
    ln_w = jnp.ones((hidden,), jnp.float32) + 0.01 * jax.random.normal(kg, (hidden,))
    ln_b = 0.01 * jax.random.normal(kbe, (hidden,), jnp.float32)

    out, (Hp, Wp) = mamba_patch_embedding(
        x, conv_w, conv_b, ln_w, ln_b, patch_size=P
    )
    out = jax.block_until_ready(out)

    ref, (Hp_r, Wp_r) = _reference(x, conv_w, conv_b, ln_w, ln_b, P)
    assert out.shape == (B, (H // P) * (W // P), hidden)
    assert (Hp, Wp) == (Hp_r, Wp_r) == (H // P, W // P)
    assert jnp.allclose(out, ref, atol=1e-4, rtol=1e-4)

    print("KERNEL_OK")
</pallas_src>

<mosaic_0001>
module attributes {stable_mosaic.version = 11 : i64} {
  func.func @_patch_embed_kernel(%arg0: i32, %arg1: i32, %arg2: memref<1x4x4x4x4x4xf32, #tpu.memory_space<vmem>>, %arg3: memref<64x128xf32, #tpu.memory_space<vmem>>, %arg4: memref<1x128xf32, #tpu.memory_space<vmem>>, %arg5: memref<1x128xf32, #tpu.memory_space<vmem>>, %arg6: memref<1x128xf32, #tpu.memory_space<vmem>>, %arg7: memref<1x16x128xf32, #tpu.memory_space<vmem>>, %arg8: memref<16x64xf32, #tpu.memory_space<vmem>>) attributes {dimension_semantics = [#tpu.dimension_semantics<parallel>, #tpu.dimension_semantics<parallel>], iteration_bounds = array<i64: 2, 1>, scalar_prefetch = 0 : i64, scratch_operands = 1 : i64, tpu.core_type = #tpu.core_type<tc>, window_params = [{transform_indices = @transform_0, window_bounds = array<i64: 1, 4, 4, 4, 4, 4>}, {pipeline_mode = #tpu.pipeline_mode<synchronous>, transform_indices = @transform_1, window_bounds = array<i64: 64, 128>}, {pipeline_mode = #tpu.pipeline_mode<synchronous>, transform_indices = @transform_2, window_bounds = array<i64: 1, 128>}, {pipeline_mode = #tpu.pipeline_mode<synchronous>, transform_indices = @transform_3, window_bounds = array<i64: 1, 128>}, {pipeline_mode = #tpu.pipeline_mode<synchronous>, transform_indices = @transform_4, window_bounds = array<i64: 1, 128>}, {transform_indices = @transform_5, window_bounds = array<i64: 1, 16, 128>}]} {
    %c0 = arith.constant 0 : index
    %c0_0 = arith.constant 0 : index
    %c0_1 = arith.constant 0 : index
    %c0_2 = arith.constant 0 : index
    %c0_3 = arith.constant 0 : index
    %c0_4 = arith.constant 0 : index
    %0 = vector.load %arg2[%c0, %c0_0, %c0_1, %c0_2, %c0_3, %c0_4] : memref<1x4x4x4x4x4xf32, #tpu.memory_space<vmem>>, vector<1x1x1x1x4x4xf32>
    %1 = vector.shape_cast %0 : vector<1x1x1x1x4x4xf32> to vector<4x4xf32>
    %c0_5 = arith.constant 0 : index
    %c0_6 = arith.constant 0 : index
    %2 = vector.load %arg8[%c0_5, %c0_6] : memref<16x64xf32, #tpu.memory_space<vmem>>, vector<4x4xf32>
    tpu.vector_store %arg8[%c0_5, %c0_6], %1 {strides = array<i32>} : memref<16x64xf32, #tpu.memory_space<vmem>>, vector<4x4xf32>,
    %c0_7 = arith.constant 0 : index
    %c0_8 = arith.constant 0 : index
    %c0_9 = arith.constant 0 : index
    %c1 = arith.constant 1 : index
    %c0_10 = arith.constant 0 : index
    %c0_11 = arith.constant 0 : index
    %3 = vector.load %arg2[%c0_7, %c0_8, %c0_9, %c1, %c0_10, %c0_11] : memref<1x4x4x4x4x4xf32, #tpu.memory_space<vmem>>, vector<1x1x1x1x4x4xf32>
    %4 = vector.shape_cast %3 : vector<1x1x1x1x4x4xf32> to vector<4x4xf32>
    %c0_12 = arith.constant 0 : index
    %c4 = arith.constant 4 : index
    %5 = vector.load %arg8[%c0_12, %c4] : memref<16x64xf32, #tpu.memory_space<vmem>>, vector<4x4xf32>
    tpu.vector_store %arg8[%c0_12, %c4], %4 {strides = array<i32>} : memref<16x64xf32, #tpu.memory_space<vmem>>, vector<4x4xf32>,
    %c0_13 = arith.constant 0 : index
    %c0_14 = arith.constant 0 : index
    %c0_15 = arith.constant 0 : index
    %c2 = arith.constant 2 : index
    %c0_16 = arith.constant 0 : index
    %c0_17 = arith.constant 0 : index
    %6 = vector.load %arg2[%c0_13, %c0_14, %c0_15, %c2, %c0_16, %c0_17] : memref<1x4x4x4x4x4xf32, #tpu.memory_space<vmem>>, vector<1x1x1x1x4x4xf32>
    %7 = vector.shape_cast %6 : vector<1x1x1x1x4x4xf32> to vector<4x4xf32>
    %c0_18 = arith.constant 0 : index
    %c8 = arith.constant 8 : index
    %8 = vector.load %arg8[%c0_18, %c8] : memref<16x64xf32, #tpu.memory_space<vmem>>, vector<4x4xf32>
    tpu.vector_store %arg8[%c0_18, %c8], %7 {strides = array<i32>} : memref<16x64xf32, #tpu.memory_space<vmem>>, vector<4x4xf32>,
    %c0_19 = arith.constant 0 : index
    %c0_20 = arith.constant 0 : index
    %c0_21 = arith.constant 0 : index
    %c3 = arith.constant 3 : index
    %c0_22 = arith.constant 0 : index
    %c0_23 = arith.constant 0 : index
    %9 = vector.load %arg2[%c0_19, %c0_20, %c0_21, %c3, %c0_22, %c0_23] : memref<1x4x4x4x4x4xf32, #tpu.memory_space<vmem>>, vector<1x1x1x1x4x4xf32>
    %10 = vector.shape_cast %9 : vector<1x1x1x1x4x4xf32> to vector<4x4xf32>
    %c0_24 = arith.constant 0 : index
    %c12 = arith.constant 12 : index
    %11 = vector.load %arg8[%c0_24, %c12] : memref<16x64xf32, #tpu.memory_space<vmem>>, vector<4x4xf32>
    tpu.vector_store %arg8[%c0_24, %c12], %10 {strides = array<i32>} : memref<16x64xf32, #tpu.memory_space<vmem>>, vector<4x4xf32>,
    %c0_25 = arith.constant 0 : index
    %c1_26 = arith.constant 1 : index
    %c0_27 = arith.constant 0 : index
    %c0_28 = arith.constant 0 : index
    %c0_29 = arith.constant 0 : index
    %c0_30 = arith.constant 0 : index
    %12 = vector.load %arg2[%c0_25, %c1_26, %c0_27, %c0_28, %c0_29, %c0_30] : memref<1x4x4x4x4x4xf32, #tpu.memory_space<vmem>>, vector<1x1x1x1x4x4xf32>
    %13 = vector.shape_cast %12 : vector<1x1x1x1x4x4xf32> to vector<4x4xf32>
    %c0_31 = arith.constant 0 : index
    %c16 = arith.constant 16 : index
    %14 = vector.load %arg8[%c0_31, %c16] : memref<16x64xf32, #tpu.memory_space<vmem>>, vector<4x4xf32>
    tpu.vector_store %arg8[%c0_31, %c16], %13 {strides = array<i32>} : memref<16x64xf32, #tpu.memory_space<vmem>>, vector<4x4xf32>,
    %c0_32 = arith.constant 0 : index
    %c1_33 = arith.constant 1 : index
    %c0_34 = arith.constant 0 : index
    %c1_35 = arith.constant 1 : index
    %c0_36 = arith.constant 0 : index
    %c0_37 = arith.constant 0 : index
    %15 = vector.load %arg2[%c0_32, %c1_33, %c0_34, %c1_35, %c0_36, %c0_37] : memref<1x4x4x4x4x4xf32, #tpu.memory_space<vmem>>, vector<1x1x1x1x4x4xf32>
    %16 = vector.shape_cast %15 : vector<1x1x1x1x4x4xf32> to vector<4x4xf32>
    %c0_38 = arith.constant 0 : index
    %c20 = arith.constant 20 : index
    %17 = vector.load %arg8[%c0_38, %c20] : memref<16x64xf32, #tpu.memory_space<vmem>>, vector<4x4xf32>
    tpu.vector_store %arg8[%c0_38, %c20], %16 {strides = array<i32>} : memref<16x64xf32, #tpu.memory_space<vmem>>, vector<4x4xf32>,
    %c0_39 = arith.constant 0 : index
    %c1_40 = arith.constant 1 : index
    %c0_41 = arith.constant 0 : index
    %c2_42 = arith.constant 2 : index
    %c0_43 = arith.constant 0 : index
    %c0_44 = arith.constant 0 : index
    %18 = vector.load %arg2[%c0_39, %c1_40, %c0_41, %c2_42, %c0_43, %c0_44] : memref<1x4x4x4x4x4xf32, #tpu.memory_space<vmem>>, vector<1x1x1x1x4x4xf32>
    %19 = vector.shape_cast %18 : vector<1x1x1x1x4x4xf32> to vector<4x4xf32>
    %c0_45 = arith.constant 0 : index
    %c24 = arith.constant 24 : index
    %20 = vector.load %arg8[%c0_45, %c24] : memref<16x64xf32, #tpu.memory_space<vmem>>, vector<4x4xf32>
    tpu.vector_store %arg8[%c0_45, %c24], %19 {strides = array<i32>} : memref<16x64xf32, #tpu.memory_space<vmem>>, vector<4x4xf32>,
    %c0_46 = arith.constant 0 : index
    %c1_47 = arith.constant 1 : index
    %c0_48 = arith.constant 0 : index
    %c3_49 = arith.constant 3 : index
    %c0_50 = arith.constant 0 : index
    %c0_51 = arith.constant 0 : index
    %21 = vector.load %arg2[%c0_46, %c1_47, %c0_48, %c3_49, %c0_50, %c0_51] : memref<1x4x4x4x4x4xf32, #tpu.memory_space<vmem>>, vector<1x1x1x1x4x4xf32>
    %22 = vector.shape_cast %21 : vector<1x1x1x1x4x4xf32> to vector<4x4xf32>
    %c0_52 = arith.constant 0 : index
    %c28 = arith.constant 28 : index
    %23 = vector.load %arg8[%c0_52, %c28] : memref<16x64xf32, #tpu.memory_space<vmem>>, vector<4x4xf32>
    tpu.vector_store %arg8[%c0_52, %c28], %22 {strides = array<i32>} : memref<16x64xf32, #tpu.memory_space<vmem>>, vector<4x4xf32>,
    %c0_53 = arith.constant 0 : index
    %c2_54 = arith.constant 2 : index
    %c0_55 = arith.constant 0 : index
    %c0_56 = arith.constant 0 : index
    %c0_57 = arith.constant 0 : index
    %c0_58 = arith.constant 0 : index
    %24 = vector.load %arg2[%c0_53, %c2_54, %c0_55, %c0_56, %c0_57, %c0_58] : memref<1x4x4x4x4x4xf32, #tpu.memory_space<vmem>>, vector<1x1x1x1x4x4xf32>
    %25 = vector.shape_cast %24 : vector<1x1x1x1x4x4xf32> to vector<4x4xf32>
    %c0_59 = arith.constant 0 : index
    %c32 = arith.constant 32 : index
    %26 = vector.load %arg8[%c0_59, %c32] : memref<16x64xf32, #tpu.memory_space<vmem>>, vector<4x4xf32>
    tpu.vector_store %arg8[%c0_59, %c32], %25 {strides = array<i32>} : memref<16x64xf32, #tpu.memory_space<vmem>>, vector<4x4xf32>,
    %c0_60 = arith.constant 0 : index
    %c2_61 = arith.constant 2 : index
    %c0_62 = arith.constant 0 : index
    %c1_63 = arith.constant 1 : index
    %c0_64 = arith.constant 0 : index
    %c0_65 = arith.constant 0 : index
    %27 = vector.load %arg2[%c0_60, %c2_61, %c0_62, %c1_63, %c0_64, %c0_65] : memref<1x4x4x4x4x4xf32, #tpu.memory_space<vmem>>, vector<1x1x1x1x4x4xf32>
    %28 = vector.shape_cast %27 : vector<1x1x1x1x4x4xf32> to vector<4x4xf32>
    %c0_66 = arith.constant 0 : index
    %c36 = arith.constant 36 : index
    %29 = vector.load %arg8[%c0_66, %c36] : memref<16x64xf32, #tpu.memory_space<vmem>>, vector<4x4xf32>
    tpu.vector_store %arg8[%c0_66, %c36], %28 {strides = array<i32>} : memref<16x64xf32, #tpu.memory_space<vmem>>, vector<4x4xf32>,
    %c0_67 = arith.constant 0 : index
    %c2_68 = arith.constant 2 : index
    %c0_69 = arith.constant 0 : index
    %c2_70 = arith.constant 2 : index
    %c0_71 = arith.constant 0 : index
    %c0_72 = arith.constant 0 : index
    %30 = vector.load %arg2[%c0_67, %c2_68, %c0_69, %c2_70, %c0_71, %c0_72] : memref<1x4x4x4x4x4xf32, #tpu.memory_space<vmem>>, vector<1x1x1x1x4x4xf32>
    %31 = vector.shape_cast %30 : vector<1x1x1x1x4x4xf32> to vector<4x4xf32>
    %c0_73 = arith.constant 0 : index
    %c40 = arith.constant 40 : index
    %32 = vector.load %arg8[%c0_73, %c40] : memref<16x64xf32, #tpu.memory_space<vmem>>, vector<4x4xf32>
    tpu.vector_store %arg8[%c0_73, %c40], %31 {strides = array<i32>} : memref<16x64xf32, #tpu.memory_space<vmem>>, vector<4x4xf32>,
    %c0_74 = arith.constant 0 : index
    %c2_75 = arith.constant 2 : index
    %c0_76 = arith.constant 0 : index
    %c3_77 = arith.constant 3 : index
    %c0_78 = arith.constant 0 : index
    %c0_79 = arith.constant 0 : index
    %33 = vector.load %arg2[%c0_74, %c2_75, %c0_76, %c3_77, %c0_78, %c0_79] : memref<1x4x4x4x4x4xf32, #tpu.memory_space<vmem>>, vector<1x1x1x1x4x4xf32>
    %34 = vector.shape_cast %33 : vector<1x1x1x1x4x4xf32> to vector<4x4xf32>
    %c0_80 = arith.constant 0 : index
    %c44 = arith.constant 44 : index
    %35 = vector.load %arg8[%c0_80, %c44] : memref<16x64xf32, #tpu.memory_space<vmem>>, vector<4x4xf32>
    tpu.vector_store %arg8[%c0_80, %c44], %34 {strides = array<i32>} : memref<16x64xf32, #tpu.memory_space<vmem>>, vector<4x4xf32>,
    %c0_81 = arith.constant 0 : index
    %c3_82 = arith.constant 3 : index
    %c0_83 = arith.constant 0 : index
    %c0_84 = arith.constant 0 : index
    %c0_85 = arith.constant 0 : index
    %c0_86 = arith.constant 0 : index
    %36 = vector.load %arg2[%c0_81, %c3_82, %c0_83, %c0_84, %c0_85, %c0_86] : memref<1x4x4x4x4x4xf32, #tpu.memory_space<vmem>>, vector<1x1x1x1x4x4xf32>
    %37 = vector.shape_cast %36 : vector<1x1x1x1x4x4xf32> to vector<4x4xf32>
    %c0_87 = arith.constant 0 : index
    %c48 = arith.constant 48 : index
    %38 = vector.load %arg8[%c0_87, %c48] : memref<16x64xf32, #tpu.memory_space<vmem>>, vector<4x4xf32>
    tpu.vector_store %arg8[%c0_87, %c48], %37 {strides = array<i32>} : memref<16x64xf32, #tpu.memory_space<vmem>>, vector<4x4xf32>,
    %c0_88 = arith.constant 0 : index
    %c3_89 = arith.constant 3 : index
    %c0_90 = arith.constant 0 : index
    %c1_91 = arith.constant 1 : index
    %c0_92 = arith.constant 0 : index
    %c0_93 = arith.constant 0 : index
    %39 = vector.load %arg2[%c0_88, %c3_89, %c0_90, %c1_91, %c0_92, %c0_93] : memref<1x4x4x4x4x4xf32, #tpu.memory_space<vmem>>, vector<1x1x1x1x4x4xf32>
    %40 = vector.shape_cast %39 : vector<1x1x1x1x4x4xf32> to vector<4x4xf32>
    %c0_94 = arith.constant 0 : index
    %c52 = arith.constant 52 : index
    %41 = vector.load %arg8[%c0_94, %c52] : memref<16x64xf32, #tpu.memory_space<vmem>>, vector<4x4xf32>
    tpu.vector_store %arg8[%c0_94, %c52], %40 {strides = array<i32>} : memref<16x64xf32, #tpu.memory_space<vmem>>, vector<4x4xf32>,
    %c0_95 = arith.constant 0 : index
    %c3_96 = arith.constant 3 : index
    %c0_97 = arith.constant 0 : index
    %c2_98 = arith.constant 2 : index
    %c0_99 = arith.constant 0 : index
    %c0_100 = arith.constant 0 : index
    %42 = vector.load %arg2[%c0_95, %c3_96, %c0_97, %c2_98, %c0_99, %c0_100] : memref<1x4x4x4x4x4xf32, #tpu.memory_space<vmem>>, vector<1x1x1x1x4x4xf32>
    %43 = vector.shape_cast %42 : vector<1x1x1x1x4x4xf32> to vector<4x4xf32>
    %c0_101 = arith.constant 0 : index
    %c56 = arith.constant 56 : index
    %44 = vector.load %arg8[%c0_101, %c56] : memref<16x64xf32, #tpu.memory_space<vmem>>, vector<4x4xf32>
    tpu.vector_store %arg8[%c0_101, %c56], %43 {strides = array<i32>} : memref<16x64xf32, #tpu.memory_space<vmem>>, vector<4x4xf32>,
    %c0_102 = arith.constant 0 : index
    %c3_103 = arith.constant 3 : index
    %c0_104 = arith.constant 0 : index
    %c3_105 = arith.constant 3 : index
    %c0_106 = arith.constant 0 : index
    %c0_107 = arith.constant 0 : index
    %45 = vector.load %arg2[%c0_102, %c3_103, %c0_104, %c3_105, %c0_106, %c0_107] : memref<1x4x4x4x4x4xf32, #tpu.memory_space<vmem>>, vector<1x1x1x1x4x4xf32>
    %46 = vector.shape_cast %45 : vector<1x1x1x1x4x4xf32> to vector<4x4xf32>
    %c0_108 = arith.constant 0 : index
    %c60 = arith.constant 60 : index
    %47 = vector.load %arg8[%c0_108, %c60] : memref<16x64xf32, #tpu.memory_space<vmem>>, vector<4x4xf32>
    tpu.vector_store %arg8[%c0_108, %c60], %46 {strides = array<i32>} : memref<16x64xf32, #tpu.memory_space<vmem>>, vector<4x4xf32>,
    %c0_109 = arith.constant 0 : index
    %c0_110 = arith.constant 0 : index
    %c1_111 = arith.constant 1 : index
    %c0_112 = arith.constant 0 : index
    %c0_113 = arith.constant 0 : index
    %c0_114 = arith.constant 0 : index
    %48 = vector.load %arg2[%c0_109, %c0_110, %c1_111, %c0_112, %c0_113, %c0_114] : memref<1x4x4x4x4x4xf32, #tpu.memory_space<vmem>>, vector<1x1x1x1x4x4xf32>
    %49 = vector.shape_cast %48 : vector<1x1x1x1x4x4xf32> to vector<4x4xf32>
    %c4_115 = arith.constant 4 : index
    %c0_116 = arith.constant 0 : index
    %50 = vector.load %arg8[%c4_115, %c0_116] : memref<16x64xf32, #tpu.memory_space<vmem>>, vector<4x4xf32>
    tpu.vector_store %arg8[%c4_115, %c0_116], %49 {strides = array<i32>} : memref<16x64xf32, #tpu.memory_space<vmem>>, vector<4x4xf32>,
    %c0_117 = arith.constant 0 : index
    %c0_118 = arith.constant 0 : index
    %c1_119 = arith.constant 1 : index
    %c1_120 = arith.constant 1 : index
    %c0_121 = arith.constant 0 : index
    %c0_122 = arith.constant 0 : index
    %51 = vector.load %arg2[%c0_117, %c0_118, %c1_119, %c1_120, %c0_121, %c0_122] : memref<1x4x4x4x4x4xf32, #tpu.memory_space<vmem>>, vector<1x1x1x1x4x4xf32>
    %52 = vector.shape_cast %51 : vector<1x1x1x1x4x4xf32> to vector<4x4xf32>
    %c4_123 = arith.constant 4 : index
    %c4_124 = arith.constant 4 : index
    %53 = vector.load %arg8[%c4_123, %c4_124] : memref<16x64xf32, #tpu.memory_space<vmem>>, vector<4x4xf32>
    tpu.vector_store %arg8[%c4_123, %c4_124], %52 {strides = array<i32>} : memref<16x64xf32, #tpu.memory_space<vmem>>, vector<4x4xf32>,
    %c0_125 = arith.constant 0 : index
    %c0_126 = arith.constant 0 : index
    %c1_127 = arith.constant 1 : index
    %c2_128 = arith.constant 2 : index
    %c0_129 = arith.constant 0 : index
    %c0_130 = arith.constant 0 : index
    %54 = vector.load %arg2[%c0_125, %c0_126, %c1_127, %c2_128, %c0_129, %c0_130] : memref<1x4x4x4x4x4xf32, #tpu.memory_space<vmem>>, vector<1x1x1x1x4x4xf32>
    %55 = vector.shape_cast %54 : vector<1x1x1x1x4x4xf32> to vector<4x4xf32>
    %c4_131 = arith.constant 4 : index
    %c8_132 = arith.constant 8 : index
    %56 = vector.load %arg8[%c4_131, %c8_132] : memref<16x64xf32, #tpu.memory_space<vmem>>, vector<4x4xf32>
    tpu.vector_store %arg8[%c4_131, %c8_132], %55 {strides = array<i32>} : memref<16x64xf32, #tpu.memory_space<vmem>>, vector<4x4xf32>,
    %c0_133 = arith.constant 0 : index
    %c0_134 = arith.constant 0 : index
    %c1_135 = arith.constant 1 : index
    %c3_136 = arith.constant 3 : index
    %c0_137 = arith.constant 0 : index
    %c0_138 = arith.constant 0 : index
    %57 = vector.load %arg2[%c0_133, %c0_134, %c1_135, %c3_136, %c0_137, %c0_138] : memref<1x4x4x4x4x4xf32, #tpu.memory_space<vmem>>, vector<1x1x1x1x4x4xf32>
    %58 = vector.shape_cast %57 : vector<1x1x1x1x4x4xf32> to vector<4x4xf32>
    %c4_139 = arith.constant 4 : index
    %c12_140 = arith.constant 12 : index
    %59 = vector.load %arg8[%c4_139, %c12_140] : memref<16x64xf32, #tpu.memory_space<vmem>>, vector<4x4xf32>
    tpu.vector_store %arg8[%c4_139, %c12_140], %58 {strides = array<i32>} : memref<16x64xf32, #tpu.memory_space<vmem>>, vector<4x4xf32>,
    %c0_141 = arith.constant 0 : index
    %c1_142 = arith.constant 1 : index
    %c1_143 = arith.constant 1 : index
    %c0_144 = arith.constant 0 : index
    %c0_145 = arith.constant 0 : index
    %c0_146 = arith.constant 0 : index
    %60 = vector.load %arg2[%c0_141, %c1_142, %c1_143, %c0_144, %c0_145, %c0_146] : memref<1x4x4x4x4x4xf32, #tpu.memory_space<vmem>>, vector<1x1x1x1x4x4xf32>
    %61 = vector.shape_cast %60 : vector<1x1x1x1x4x4xf32> to vector<4x4xf32>
    %c4_147 = arith.constant 4 : index
    %c16_148 = arith.constant 16 : index
    %62 = vector.load %arg8[%c4_147, %c16_148] : memref<16x64xf32, #tpu.memory_space<vmem>>, vector<4x4xf32>
    tpu.vector_store %arg8[%c4_147, %c16_148], %61 {strides = array<i32>} : memref<16x64xf32, #tpu.memory_space<vmem>>, vector<4x4xf32>,
    %c0_149 = arith.constant 0 : index
    %c1_150 = arith.constant 1 : index
    %c1_151 = arith.constant 1 : index
    %c1_152 = arith.constant 1 : index
    %c0_153 = arith.constant 0 : index
    %c0_154 = arith.constant 0 : index
    %63 = vector.load %arg2[%c0_149, %c1_150, %c1_151, %c1_152, %c0_153, %c0_154] : memref<1x4x4x4x4x4xf32, #tpu.memory_space<vmem>>, vector<1x1x1x1x4x4xf32>
    %64 = vector.shape_cast %63 : vector<1x1x1x1x4x4xf32> to vector<4x4xf32>
    %c4_155 = arith.constant 4 : index
    %c20_156 = arith.constant 20 : index
    %65 = vector.load %arg8[%c4_155, %c20_156] : memref<16x64xf32, #tpu.memory_space<vmem>>, vector<4x4xf32>
    tpu.vector_store %arg8[%c4_155, %c20_156], %64 {strides = array<i32>} : memref<16x64xf32, #tpu.memory_space<vmem>>, vector<4x4xf32>,
    %c0_157 = arith.constant 0 : index
    %c1_158 = arith.constant 1 : index
    %c1_159 = arith.constant 1 : index
    %c2_160 = arith.constant 2 : index
    %c0_161 = arith.constant 0 : index
    %c0_162 = arith.constant 0 : index
    %66 = vector.load %arg2[%c0_157, %c1_158, %c1_159, %c2_160, %c0_161, %c0_162] : memref<1x4x4x4x4x4xf32, #tpu.memory_space<vmem>>, vector<1x1x1x1x4x4xf32>
    %67 = vector.shape_cast %66 : vector<1x1x1x1x4x4xf32> to vector<4x4xf32>
    %c4_163 = arith.constant 4 : index
    %c24_164 = arith.constant 24 : index
    %68 = vector.load %arg8[%c4_163, %c24_164] : memref<16x64xf32, #tpu.memory_space<vmem>>, vector<4x4xf32>
    tpu.vector_store %arg8[%c4_163, %c24_164], %67 {strides = array<i32>} : memref<16x64xf32, #tpu.memory_space<vmem>>, vector<4x4xf32>,
    %c0_165 = arith.constant 0 : index
    %c1_166 = arith.constant 1 : index
    %c1_167 = arith.constant 1 : index
    %c3_168 = arith.constant 3 : index
    %c0_169 = arith.constant 0 : index
    %c0_170 = arith.constant 0 : index
    %69 = vector.load %arg2[%c0_165, %c1_166, %c1_167, %c3_168, %c0_169, %c0_170] : memref<1x4x4x4x4x4xf32, #tpu.memory_space<vmem>>, vector<1x1x1x1x4x4xf32>
    %70 = vector.shape_cast %69 : vector<1x1x1x1x4x4xf32> to vector<4x4xf32>
    %c4_171 = arith.constant 4 : index
    %c28_172 = arith.constant 28 : index
    %71 = vector.load %arg8[%c4_171, %c28_172] : memref<16x64xf32, #tpu.memory_space<vmem>>, vector<4x4xf32>
    tpu.vector_store %arg8[%c4_171, %c28_172], %70 {strides = array<i32>} : memref<16x64xf32, #tpu.memory_space<vmem>>, vector<4x4xf32>,
    %c0_173 = arith.constant 0 : index
    %c2_174 = arith.constant 2 : index
    %c1_175 = arith.constant 1 : index
    %c0_176 = arith.constant 0 : index
    %c0_177 = arith.constant 0 : index
    %c0_178 = arith.constant 0 : index
    %72 = vector.load %arg2[%c0_173, %c2_174, %c1_175, %c0_176, %c0_177, %c0_178] : memref<1x4x4x4x4x4xf32, #tpu.memory_space<vmem>>, vector<1x1x1x1x4x4xf32>
    %73 = vector.shape_cast %72 : vector<1x1x1x1x4x4xf32> to vector<4x4xf32>
    %c4_179 = arith.constant 4 : index
    %c32_180 = arith.constant 32 : index
    %74 = vector.load %arg8[%c4_179, %c32_180] : memref<16x64xf32, #tpu.memory_space<vmem>>, vector<4x4xf32>
    tpu.vector_store %arg8[%c4_179, %c32_180], %73 {strides = array<i32>} : memref<16x64xf32, #tpu.memory_space<vmem>>, vector<4x4xf32>,
    %c0_181 = arith.constant 0 : index
    %c2_182 = arith.constant 2 : index
    %c1_183 = arith.constant 1 : index
    %c1_184 = arith.constant 1 : index
    %c0_185 = arith.constant 0 : index
    %c0_186 = arith.constant 0 : index
    %75 = vector.load %arg2[%c0_181, %c2_182, %c1_183, %c1_184, %c0_185, %c0_186] : memref<1x4x4x4x4x4xf32, #tpu.memory_space<vmem>>, vector<1x1x1x1x4x4xf32>
    %76 = vector.shape_cast %75 : vector<1x1x1x1x4x4xf32> to vector<4x4xf32>
    %c4_187 = arith.constant 4 : index
    %c36_188 = arith.constant 36 : index
    %77 = vector.load %arg8[%c4_187, %c36_188] : memref<16x64xf32, #tpu.memory_space<vmem>>, vector<4x4xf32>
    tpu.vector_store %arg8[%c4_187, %c36_188], %76 {strides = array<i32>} : memref<16x64xf32, #tpu.memory_space<vmem>>, vector<4x4xf32>,
    %c0_189 = arith.constant 0 : index
    %c2_190 = arith.constant 2 : index
    %c1_191 = arith.constant 1 : index
    %c2_192 = arith.constant 2 : index
    %c0_193 = arith.constant 0 : index
    %c0_194 = arith.constant 0 : index
    %78 = vector.load %arg2[%c0_189, %c2_190, %c1_191, %c2_192, %c0_193, %c0_194] : memref<1x4x4x4x4x4xf32, #tpu.memory_space<vmem>>, vector<1x1x1x1x4x4xf32>
    %79 = vector.shape_cast %78 : vector<1x1x1x1x4x4xf32> to vector<4x4xf32>
    %c4_195 = arith.constant 4 : index
    %c40_196 = arith.constant 40 : index
    %80 = vector.load %arg8[%c4_195, %c40_196] : memref<16x64xf32, #tpu.memory_space<vmem>>, vector<4x4xf32>
    tpu.vector_store %arg8[%c4_195, %c40_196], %79 {strides = array<i32>} : memref<16x64xf32, #tpu.memory_space<vmem>>, vector<4x4xf32>,
    %c0_197 = arith.constant 0 : index
    %c2_198 = arith.constant 2 : index
    %c1_199 = arith.constant 1 : index
    %c3_200 = arith.constant 3 : index
    %c0_201 = arith.constant 0 : index
    %c0_202 = arith.constant 0 : index
    %81 = vector.load %arg2[%c0_197, %c2_198, %c1_199, %c3_200, %c0_201, %c0_202] : memref<1x4x4x4x4x4xf32, #tpu.memory_space<vmem>>, vector<1x1x1x1x4x4xf32>
    %82 = vector.shape_cast %81 : vector<1x1x1x1x4x4xf32> to vector<4x4xf32>
    %c4_203 = arith.constant 4 : index
    %c44_204 = arith.constant 44 : index
    %83 = vector.load %arg8[%c4_203, %c44_204] : memref<16x64xf32, #tpu.memory_space<vmem>>, vector<4x4xf32>
    tpu.vector_store %arg8[%c4_203, %c44_204], %82 {strides = array<i32>} : memref<16x64xf32, #tpu.memory_space<vmem>>, vector<4x4xf32>,
    %c0_205 = arith.constant 0 : index
    %c3_206 = arith.constant 3 : index
    %c1_207 = arith.constant 1 : index
    %c0_208 = arith.constant 0 : index
    %c0_209 = arith.constant 0 : index
    %c0_210 = arith.constant 0 : index
    %84 = vector.load %arg2[%c0_205, %c3_206, %c1_207, %c0_208, %c0_209, %c0_210] : memref<1x4x4x4x4x4xf32, #tpu.memory_space<vmem>>, vector<1x1x1x1x4x4xf32>
    %85 = vector.shape_cast %84 : vector<1x1x1x1x4x4xf32> to vector<4x4xf32>
    %c4_211 = arith.constant 4 : index
    %c48_212 = arith.constant 48 : index
    %86 = vector.load %arg8[%c4_211, %c48_212] : memref<16x64xf32, #tpu.memory_space<vmem>>, vector<4x4xf32>
    tpu.vector_store %arg8[%c4_211, %c48_212], %85 {strides = array<i32>} : memref<16x64xf32, #tpu.memory_space<vmem>>, vector<4x4xf32>,
    %c0_213 = arith.constant 0 : index
    %c3_214 = arith.constant 3 : index
    %c1_215 = arith.constant 1 : index
    %c1_216 = arith.constant 1 : index
    %c0_217 = arith.constant 0 : index
    %c0_218 = arith.constant 0 : index
    %87 = vector.load %arg2[%c0_213, %c3_214, %c1_215, %c1_216, %c0_217, %c0_218] : memref<1x4x4x4x4x4xf32, #tpu.memory_space<vmem>>, vector<1x1x1x1x4x4xf32>
    %88 = vector.shape_cast %87 : vector<1x1x1x1x4x4xf32> to vector<4x4xf32>
    %c4_219 = arith.constant 4 : index
    %c52_220 = arith.constant 52 : index
    %89 = vector.load %arg8[%c4_219, %c52_220] : memref<16x64xf32, #tpu.memory_space<vmem>>, vector<4x4xf32>
    tpu.vector_store %arg8[%c4_219, %c52_220], %88 {strides = array<i32>} : memref<16x64xf32, #tpu.memory_space<vmem>>, vector<4x4xf32>,
    %c0_221 = arith.constant 0 : index
    %c3_222 = arith.constant 3 : index
    %c1_223 = arith.constant 1 : index
    %c2_224 = arith.constant 2 : index
    %c0_225 = arith.constant 0 : index
    %c0_226 = arith.constant 0 : index
    %90 = vector.load %arg2[%c0_221, %c3_222, %c1_223, %c2_224, %c0_225, %c0_226] : memref<1x4x4x4x4x4xf32, #tpu.memory_space<vmem>>, vector<1x1x1x1x4x4xf32>
    %91 = vector.shape_cast %90 : vector<1x1x1x1x4x4xf32> to vector<4x4xf32>
    %c4_227 = arith.constant 4 : index
    %c56_228 = arith.constant 56 : index
    %92 = vector.load %arg8[%c4_227, %c56_228] : memref<16x64xf32, #tpu.memory_space<vmem>>, vector<4x4xf32>
    tpu.vector_store %arg8[%c4_227, %c56_228], %91 {strides = array<i32>} : memref<16x64xf32, #tpu.memory_space<vmem>>, vector<4x4xf32>,
    %c0_229 = arith.constant 0 : index
    %c3_230 = arith.constant 3 : index
    %c1_231 = arith.constant 1 : index
    %c3_232 = arith.constant 3 : index
    %c0_233 = arith.constant 0 : index
    %c0_234 = arith.constant 0 : index
    %93 = vector.load %arg2[%c0_229, %c3_230, %c1_231, %c3_232, %c0_233, %c0_234] : memref<1x4x4x4x4x4xf32, #tpu.memory_space<vmem>>, vector<1x1x1x1x4x4xf32>
    %94 = vector.shape_cast %93 : vector<1x1x1x1x4x4xf32> to vector<4x4xf32>
    %c4_235 = arith.constant 4 : index
    %c60_236 = arith.constant 60 : index
    %95 = vector.load %arg8[%c4_235, %c60_236] : memref<16x64xf32, #tpu.memory_space<vmem>>, vector<4x4xf32>
    tpu.vector_store %arg8[%c4_235, %c60_236], %94 {strides = array<i32>} : memref<16x64xf32, #tpu.memory_space<vmem>>, vector<4x4xf32>,
    %c0_237 = arith.constant 0 : index
    %c0_238 = arith.constant 0 : index
    %c2_239 = arith.constant 2 : index
    %c0_240 = arith.constant 0 : index
    %c0_241 = arith.constant 0 : index
    %c0_242 = arith.constant 0 : index
    %96 = vector.load %arg2[%c0_237, %c0_238, %c2_239, %c0_240, %c0_241, %c0_242] : memref<1x4x4x4x4x4xf32, #tpu.memory_space<vmem>>, vector<1x1x1x1x4x4xf32>
    %97 = vector.shape_cast %96 : vector<1x1x1x1x4x4xf32> to vector<4x4xf32>
    %c8_243 = arith.constant 8 : index
    %c0_244 = arith.constant 0 : index
    %98 = vector.load %arg8[%c8_243, %c0_244] : memref<16x64xf32, #tpu.memory_space<vmem>>, vector<4x4xf32>
    tpu.vector_store %arg8[%c8_243, %c0_244], %97 {strides = array<i32>} : memref<16x64xf32, #tpu.memory_space<vmem>>, vector<4x4xf32>,
    %c0_245 = arith.constant 0 : index
    %c0_246 = arith.constant 0 : index
    %c2_247 = arith.constant 2 : index
    %c1_248 = arith.constant 1 : index
    %c0_249 = arith.constant 0 : index
    %c0_250 = arith.constant 0 : index
    %99 = vector.load %arg2[%c0_245, %c0_246, %c2_247, %c1_248, %c0_249, %c0_250] : memref<1x4x4x4x4x4xf32, #tpu.memory_space<vmem>>, vector<1x1x1x1x4x4xf32>
    %100 = vector.shape_cast %99 : vector<1x1x1x1x4x4xf32> to vector<4x4xf32>
    %c8_251 = arith.constant 8 : index
    %c4_252 = arith.constant 4 : index
    %101 = vector.load %arg8[%c8_251, %c4_252] : memref<16x64xf32, #tpu.memory_space<vmem>>, vector<4x4xf32>
    tpu.vector_store %arg8[%c8_251, %c4_252], %100 {strides = array<i32>} : memref<16x64xf32, #tpu.memory_space<vmem>>, vector<4x4xf32>,
    %c0_253 = arith.constant 0 : index
    %c0_254 = arith.constant 0 : index
    %c2_255 = arith.constant 2 : index
    %c2_256 = arith.constant 2 : index
    %c0_257 = arith.constant 0 : index
    %c0_258 = arith.constant 0 : index
    %102 = vector.load %arg2[%c0_253, %c0_254, %c2_255, %c2_256, %c0_257, %c0_258] : memref<1x4x4x4x4x4xf32, #tpu.memory_space<vmem>>, vector<1x1x1x1x4x4xf32>
    %103 = vector.shape_cast %102 : vector<1x1x1x1x4x4xf32> to vector<4x4xf32>
    %c8_259 = arith.constant 8 : index
    %c8_260 = arith.constant 8 : index
    %104 = vector.load %arg8[%c8_259, %c8_260] : memref<16x64xf32, #tpu.memory_space<vmem>>, vector<4x4xf32>
    tpu.vector_store %arg8[%c8_259, %c8_260], %103 {strides = array<i32>} : memref<16x64xf32, #tpu.memory_space<vmem>>, vector<4x4xf32>,
    %c0_261 = arith.constant 0 : index
    %c0_262 = arith.constant 0 : index
    %c2_263 = arith.constant 2 : index
    %c3_264 = arith.constant 3 : index
    %c0_265 = arith.constant 0 : index
    %c0_266 = arith.constant 0 : index
    %105 = vector.load %arg2[%c0_261, %c0_262, %c2_263, %c3_264, %c0_265, %c0_266] : memref<1x4x4x4x4x4xf32, #tpu.memory_space<vmem>>, vector<1x1x1x1x4x4xf32>
    %106 = vector.shape_cast %105 : vector<1x1x1x1x4x4xf32> to vector<4x4xf32>
    %c8_267 = arith.constant 8 : index
    %c12_268 = arith.constant 12 : index
    %107 = vector.load %arg8[%c8_267, %c12_268] : memref<16x64xf32, #tpu.memory_space<vmem>>, vector<4x4xf32>
    tpu.vector_store %arg8[%c8_267, %c12_268], %106 {strides = array<i32>} : memref<16x64xf32, #tpu.memory_space<vmem>>, vector<4x4xf32>,
    %c0_269 = arith.constant 0 : index
    %c1_270 = arith.constant 1 : index
    %c2_271 = arith.constant 2 : index
    %c0_272 = arith.constant 0 : index
    %c0_273 = arith.constant 0 : index
    %c0_274 = arith.constant 0 : index
    %108 = vector.load %arg2[%c0_269, %c1_270, %c2_271, %c0_272, %c0_273, %c0_274] : memref<1x4x4x4x4x4xf32, #tpu.memory_space<vmem>>, vector<1x1x1x1x4x4xf32>
    %109 = vector.shape_cast %108 : vector<1x1x1x1x4x4xf32> to vector<4x4xf32>
    %c8_275 = arith.constant 8 : index
    %c16_276 = arith.constant 16 : index
    %110 = vector.load %arg8[%c8_275, %c16_276] : memref<16x64xf32, #tpu.memory_space<vmem>>, vector<4x4xf32>
    tpu.vector_store %arg8[%c8_275, %c16_276], %109 {strides = array<i32>} : memref<16x64xf32, #tpu.memory_space<vmem>>, vector<4x4xf32>,
    %c0_277 = arith.constant 0 : index
    %c1_278 = arith.constant 1 : index
    %c2_279 = arith.constant 2 : index
    %c1_280 = arith.constant 1 : index
    %c0_281 = arith.constant 0 : index
    %c0_282 = arith.constant 0 : index
    %111 = vector.load %arg2[%c0_277, %c1_278, %c2_279, %c1_280, %c0_281, %c0_282] : memref<1x4x4x4x4x4xf32, #tpu.memory_space<vmem>>, vector<1x1x1x1x4x4xf32>
    %112 = vector.shape_cast %111 : vector<1x1x1x1x4x4xf32> to vector<4x4xf32>
    %c8_283 = arith.constant 8 : index
    %c20_284 = arith.constant 20 : index
    %113 = vector.load %arg8[%c8_283, %c20_284] : memref<16x64xf32, #tpu.memory_space<vmem>>, vector<4x4xf32>
    tpu.vector_store %arg8[%c8_283, %c20_284], %112 {strides = array<i32>} : memref<16x64xf32, #tpu.memory_space<vmem>>, vector<4x4xf32>,
    %c0_285 = arith.constant 0 : index
    %c1_286 = arith.constant 1 : index
    %c2_287 = arith.constant 2 : index
    %c2_288 = arith.constant 2 : index
    %c0_289 = arith.constant 0 : index
    %c0_290 = arith.constant 0 : index
    %114 = vector.load %arg2[%c0_285, %c1_286, %c2_287, %c2_288, %c0_289, %c0_290] : memref<1x4x4x4x4x4xf32, #tpu.memory_space<vmem>>, vector<1x1x1x1x4x4xf32>
    %115 = vector.shape_cast %114 : vector<1x1x1x1x4x4xf32> to vector<4x4xf32>
    %c8_291 = arith.constant 8 : index
    %c24_292 = arith.constant 24 : index
    %116 = vector.load %arg8[%c8_291, %c24_292] : memref<16x64xf32, #tpu.memory_space<vmem>>, vector<4x4xf32>
    tpu.vector_store %arg8[%c8_291, %c24_292], %115 {strides = array<i32>} : memref<16x64xf32, #tpu.memory_space<vmem>>, vector<4x4xf32>,
    %c0_293 = arith.constant 0 : index
    %c1_294 = arith.constant 1 : index
    %c2_295 = arith.constant 2 : index
    %c3_296 = arith.constant 3 : index
    %c0_297 = arith.constant 0 : index
    %c0_298 = arith.constant 0 : index
    %117 = vector.load %arg2[%c0_293, %c1_294, %c2_295, %c3_296, %c0_297, %c0_298] : memref<1x4x4x4x4x4xf32, #tpu.memory_space<vmem>>, vector<1x1x1x1x4x4xf32>
    %118 = vector.shape_cast %117 : vector<1x1x1x1x4x4xf32> to vector<4x4xf32>
    %c8_299 = arith.constant 8 : index
    %c28_300 = arith.constant 28 : index
    %119 = vector.load %arg8[%c8_299, %c28_300] : memref<16x64xf32, #tpu.memory_space<vmem>>, vector<4x4xf32>
    tpu.vector_store %arg8[%c8_299, %c28_300], %118 {strides = array<i32>} : memref<16x64xf32, #tpu.memory_space<vmem>>, vector<4x4xf32>,
    %c0_301 = arith.constant 0 : index
    %c2_302 = arith.constant 2 : index
    %c2_303 = arith.constant 2 : index
    %c0_304 = arith.constant 0 : index
    %c0_305 = arith.constant 0 : index
    %c0_306 = arith.constant 0 : index
    %120 = vector.load %arg2[%c0_301, %c2_302, %c2_303, %c0_304, %c0_305, %c0_306] : memref<1x4x4x4x4x4xf32, #tpu.memory_space<vmem>>, vector<1x1x1x1x4x4xf32>
    %121 = vector.shape_cast %120 : vector<1x1x1x1x4x4xf32> to vector<4x4xf32>
    %c8_307 = arith.constant 8 : index
    %c32_308 = arith.constant 32 : index
    %122 = vector.load %arg8[%c8_307, %c32_308] : memref<16x64xf32, #tpu.memory_space<vmem>>, vector<4x4xf32>
    tpu.vector_store %arg8[%c8_307, %c32_308], %121 {strides = array<i32>} : memref<16x64xf32, #tpu.memory_space<vmem>>, vector<4x4xf32>,
    %c0_309 = arith.constant 0 : index
    %c2_310 = arith.constant 2 : index
    %c2_311 = arith.constant 2 : index
    %c1_312 = arith.constant 1 : index
    %c0_313 = arith.constant 0 : index
    %c0_314 = arith.constant 0 : index
    %123 = vector.load %arg2[%c0_309, %c2_310, %c2_311, %c1_312, %c0_313, %c0_314] : memref<1x4x4x4x4x4xf32, #tpu.memory_space<vmem>>, vector<1x1x1x1x4x4xf32>
    %124 = vector.shape_cast %123 : vector<1x1x1x1x4x4xf32> to vector<4x4xf32>
    %c8_315 = arith.constant 8 : index
    %c36_316 = arith.constant 36 : index
    %125 = vector.load %arg8[%c8_315, %c36_316] : memref<16x64xf32, #tpu.memory_space<vmem>>, vector<4x4xf32>
    tpu.vector_store %arg8[%c8_315, %c36_316], %124 {strides = array<i32>} : memref<16x64xf32, #tpu.memory_space<vmem>>, vector<4x4xf32>,
    %c0_317 = arith.constant 0 : index
    %c2_318 = arith.constant 2 : index
    %c2_319 = arith.constant 2 : index
    %c2_320 = arith.constant 2 : index
    %c0_321 = arith.constant 0 : index
    %c0_322 = arith.constant 0 : index
    %126 = vector.load %arg2[%c0_317, %c2_318, %c2_319, %c2_320, %c0_321, %c0_322] : memref<1x4x4x4x4x4xf32, #tpu.memory_space<vmem>>, vector<1x1x1x1x4x4xf32>
    %127 = vector.shape_cast %126 : vector<1x1x1x1x4x4xf32> to vector<4x4xf32>
    %c8_323 = arith.constant 8 : index
    %c40_324 = arith.constant 40 : index
    %128 = vector.load %arg8[%c8_323, %c40_324] : memref<16x64xf32, #tpu.memory_space<vmem>>, vector<4x4xf32>
    tpu.vector_store %arg8[%c8_323, %c40_324], %127 {strides = array<i32>} : memref<16x64xf32, #tpu.memory_space<vmem>>, vector<4x4xf32>,
    %c0_325 = arith.constant 0 : index
    %c2_326 = arith.constant 2 : index
    %c2_327 = arith.constant 2 : index
    %c3_328 = arith.constant 3 : index
    %c0_329 = arith.constant 0 : index
    %c0_330 = arith.constant 0 : index
    %129 = vector.load %arg2[%c0_325, %c2_326, %c2_327, %c3_328, %c0_329, %c0_330] : memref<1x4x4x4x4x4xf32, #tpu.memory_space<vmem>>, vector<1x1x1x1x4x4xf32>
    %130 = vector.shape_cast %129 : vector<1x1x1x1x4x4xf32> to vector<4x4xf32>
    %c8_331 = arith.constant 8 : index
    %c44_332 = arith.constant 44 : index
    %131 = vector.load %arg8[%c8_331, %c44_332] : memref<16x64xf32, #tpu.memory_space<vmem>>, vector<4x4xf32>
    tpu.vector_store %arg8[%c8_331, %c44_332], %130 {strides = array<i32>} : memref<16x64xf32, #tpu.memory_space<vmem>>, vector<4x4xf32>,
    %c0_333 = arith.constant 0 : index
    %c3_334 = arith.constant 3 : index
    %c2_335 = arith.constant 2 : index
    %c0_336 = arith.constant 0 : index
    %c0_337 = arith.constant 0 : index
    %c0_338 = arith.constant 0 : index
    %132 = vector.load %arg2[%c0_333, %c3_334, %c2_335, %c0_336, %c0_337, %c0_338] : memref<1x4x4x4x4x4xf32, #tpu.memory_space<vmem>>, vector<1x1x1x1x4x4xf32>
    %133 = vector.shape_cast %132 : vector<1x1x1x1x4x4xf32> to vector<4x4xf32>
    %c8_339 = arith.constant 8 : index
    %c48_340 = arith.constant 48 : index
    %134 = vector.load %arg8[%c8_339, %c48_340] : memref<16x64xf32, #tpu.memory_space<vmem>>, vector<4x4xf32>
    tpu.vector_store %arg8[%c8_339, %c48_340], %133 {strides = array<i32>} : memref<16x64xf32, #tpu.memory_space<vmem>>, vector<4x4xf32>,
    %c0_341 = arith.constant 0 : index
    %c3_342 = arith.constant 3 : index
    %c2_343 = arith.constant 2 : index
    %c1_344 = arith.constant 1 : index
    %c0_345 = arith.constant 0 : index
    %c0_346 = arith.constant 0 : index
    %135 = vector.load %arg2[%c0_341, %c3_342, %c2_343, %c1_344, %c0_345, %c0_346] : memref<1x4x4x4x4x4xf32, #tpu.memory_space<vmem>>, vector<1x1x1x1x4x4xf32>
    %136 = vector.shape_cast %135 : vector<1x1x1x1x4x4xf32> to vector<4x4xf32>
    %c8_347 = arith.constant 8 : index
    %c52_348 = arith.constant 52 : index
    %137 = vector.load %arg8[%c8_347, %c52_348] : memref<16x64xf32, #tpu.memory_space<vmem>>, vector<4x4xf32>
    tpu.vector_store %arg8[%c8_347, %c52_348], %136 {strides = array<i32>} : memref<16x64xf32, #tpu.memory_space<vmem>>, vector<4x4xf32>,
    %c0_349 = arith.constant 0 : index
    %c3_350 = arith.constant 3 : index
    %c2_351 = arith.constant 2 : index
    %c2_352 = arith.constant 2 : index
    %c0_353 = arith.constant 0 : index
    %c0_354 = arith.constant 0 : index
    %138 = vector.load %arg2[%c0_349, %c3_350, %c2_351, %c2_352, %c0_353, %c0_354] : memref<1x4x4x4x4x4xf32, #tpu.memory_space<vmem>>, vector<1x1x1x1x4x4xf32>
    %139 = vector.shape_cast %138 : vector<1x1x1x1x4x4xf32> to vector<4x4xf32>
    %c8_355 = arith.constant 8 : index
    %c56_356 = arith.constant 56 : index
    %140 = vector.load %arg8[%c8_355, %c56_356] : memref<16x64xf32, #tpu.memory_space<vmem>>, vector<4x4xf32>
    tpu.vector_store %arg8[%c8_355, %c56_356], %139 {strides = array<i32>} : memref<16x64xf32, #tpu.memory_space<vmem>>, vector<4x4xf32>,
    %c0_357 = arith.constant 0 : index
    %c3_358 = arith.constant 3 : index
    %c2_359 = arith.constant 2 : index
    %c3_360 = arith.constant 3 : index
    %c0_361 = arith.constant 0 : index
    %c0_362 = arith.constant 0 : index
    %141 = vector.load %arg2[%c0_357, %c3_358, %c2_359, %c3_360, %c0_361, %c0_362] : memref<1x4x4x4x4x4xf32, #tpu.memory_space<vmem>>, vector<1x1x1x1x4x4xf32>
    %142 = vector.shape_cast %141 : vector<1x1x1x1x4x4xf32> to vector<4x4xf32>
    %c8_363 = arith.constant 8 : index
    %c60_364 = arith.constant 60 : index
    %143 = vector.load %arg8[%c8_363, %c60_364] : memref<16x64xf32, #tpu.memory_space<vmem>>, vector<4x4xf32>
    tpu.vector_store %arg8[%c8_363, %c60_364], %142 {strides = array<i32>} : memref<16x64xf32, #tpu.memory_space<vmem>>, vector<4x4xf32>,
    %c0_365 = arith.constant 0 : index
    %c0_366 = arith.constant 0 : index
    %c3_367 = arith.constant 3 : index
    %c0_368 = arith.constant 0 : index
    %c0_369 = arith.constant 0 : index
    %c0_370 = arith.constant 0 : index
    %144 = vector.load %arg2[%c0_365, %c0_366, %c3_367, %c0_368, %c0_369, %c0_370] : memref<1x4x4x4x4x4xf32, #tpu.memory_space<vmem>>, vector<1x1x1x1x4x4xf32>
    %145 = vector.shape_cast %144 : vector<1x1x1x1x4x4xf32> to vector<4x4xf32>
    %c12_371 = arith.constant 12 : index
    %c0_372 = arith.constant 0 : index
    %146 = vector.load %arg8[%c12_371, %c0_372] : memref<16x64xf32, #tpu.memory_space<vmem>>, vector<4x4xf32>
    tpu.vector_store %arg8[%c12_371, %c0_372], %145 {strides = array<i32>} : memref<16x64xf32, #tpu.memory_space<vmem>>, vector<4x4xf32>,
    %c0_373 = arith.constant 0 : index
    %c0_374 = arith.constant 0 : index
    %c3_375 = arith.constant 3 : index
    %c1_376 = arith.constant 1 : index
    %c0_377 = arith.constant 0 : index
    %c0_378 = arith.constant 0 : index
    %147 = vector.load %arg2[%c0_373, %c0_374, %c3_375, %c1_376, %c0_377, %c0_378] : memref<1x4x4x4x4x4xf32, #tpu.memory_space<vmem>>, vector<1x1x1x1x4x4xf32>
    %148 = vector.shape_cast %147 : vector<1x1x1x1x4x4xf32> to vector<4x4xf32>
    %c12_379 = arith.constant 12 : index
    %c4_380 = arith.constant 4 : index
    %149 = vector.load %arg8[%c12_379, %c4_380] : memref<16x64xf32, #tpu.memory_space<vmem>>, vector<4x4xf32>
    tpu.vector_store %arg8[%c12_379, %c4_380], %148 {strides = array<i32>} : memref<16x64xf32, #tpu.memory_space<vmem>>, vector<4x4xf32>,
    %c0_381 = arith.constant 0 : index
    %c0_382 = arith.constant 0 : index
    %c3_383 = arith.constant 3 : index
    %c2_384 = arith.constant 2 : index
    %c0_385 = arith.constant 0 : index
    %c0_386 = arith.constant 0 : index
    %150 = vector.load %arg2[%c0_381, %c0_382, %c3_383, %c2_384, %c0_385, %c0_386] : memref<1x4x4x4x4x4xf32, #tpu.memory_space<vmem>>, vector<1x1x1x1x4x4xf32>
    %151 = vector.shape_cast %150 : vector<1x1x1x1x4x4xf32> to vector<4x4xf32>
    %c12_387 = arith.constant 12 : index
    %c8_388 = arith.constant 8 : index
    %152 = vector.load %arg8[%c12_387, %c8_388] : memref<16x64xf32, #tpu.memory_space<vmem>>, vector<4x4xf32>
    tpu.vector_store %arg8[%c12_387, %c8_388], %151 {strides = array<i32>} : memref<16x64xf32, #tpu.memory_space<vmem>>, vector<4x4xf32>,
    %c0_389 = arith.constant 0 : index
    %c0_390 = arith.constant 0 : index
    %c3_391 = arith.constant 3 : index
    %c3_392 = arith.constant 3 : index
    %c0_393 = arith.constant 0 : index
    %c0_394 = arith.constant 0 : index
    %153 = vector.load %arg2[%c0_389, %c0_390, %c3_391, %c3_392, %c0_393, %c0_394] : memref<1x4x4x4x4x4xf32, #tpu.memory_space<vmem>>, vector<1x1x1x1x4x4xf32>
    %154 = vector.shape_cast %153 : vector<1x1x1x1x4x4xf32> to vector<4x4xf32>
    %c12_395 = arith.constant 12 : index
    %c12_396 = arith.constant 12 : index
    %155 = vector.load %arg8[%c12_395, %c12_396] : memref<16x64xf32, #tpu.memory_space<vmem>>, vector<4x4xf32>
    tpu.vector_store %arg8[%c12_395, %c12_396], %154 {strides = array<i32>} : memref<16x64xf32, #tpu.memory_space<vmem>>, vector<4x4xf32>,
    %c0_397 = arith.constant 0 : index
    %c1_398 = arith.constant 1 : index
    %c3_399 = arith.constant 3 : index
    %c0_400 = arith.constant 0 : index
    %c0_401 = arith.constant 0 : index
    %c0_402 = arith.constant 0 : index
    %156 = vector.load %arg2[%c0_397, %c1_398, %c3_399, %c0_400, %c0_401, %c0_402] : memref<1x4x4x4x4x4xf32, #tpu.memory_space<vmem>>, vector<1x1x1x1x4x4xf32>
    %157 = vector.shape_cast %156 : vector<1x1x1x1x4x4xf32> to vector<4x4xf32>
    %c12_403 = arith.constant 12 : index
    %c16_404 = arith.constant 16 : index
    %158 = vector.load %arg8[%c12_403, %c16_404] : memref<16x64xf32, #tpu.memory_space<vmem>>, vector<4x4xf32>
    tpu.vector_store %arg8[%c12_403, %c16_404], %157 {strides = array<i32>} : memref<16x64xf32, #tpu.memory_space<vmem>>, vector<4x4xf32>,
    %c0_405 = arith.constant 0 : index
    %c1_406 = arith.constant 1 : index
    %c3_407 = arith.constant 3 : index
    %c1_408 = arith.constant 1 : index
    %c0_409 = arith.constant 0 : index
    %c0_410 = arith.constant 0 : index
    %159 = vector.load %arg2[%c0_405, %c1_406, %c3_407, %c1_408, %c0_409, %c0_410] : memref<1x4x4x4x4x4xf32, #tpu.memory_space<vmem>>, vector<1x1x1x1x4x4xf32>
    %160 = vector.shape_cast %159 : vector<1x1x1x1x4x4xf32> to vector<4x4xf32>
    %c12_411 = arith.constant 12 : index
    %c20_412 = arith.constant 20 : index
    %161 = vector.load %arg8[%c12_411, %c20_412] : memref<16x64xf32, #tpu.memory_space<vmem>>, vector<4x4xf32>
    tpu.vector_store %arg8[%c12_411, %c20_412], %160 {strides = array<i32>} : memref<16x64xf32, #tpu.memory_space<vmem>>, vector<4x4xf32>,
    %c0_413 = arith.constant 0 : index
    %c1_414 = arith.constant 1 : index
    %c3_415 = arith.constant 3 : index
    %c2_416 = arith.constant 2 : index
    %c0_417 = arith.constant 0 : index
    %c0_418 = arith.constant 0 : index
    %162 = vector.load %arg2[%c0_413, %c1_414, %c3_415, %c2_416, %c0_417, %c0_418] : memref<1x4x4x4x4x4xf32, #tpu.memory_space<vmem>>, vector<1x1x1x1x4x4xf32>
    %163 = vector.shape_cast %162 : vector<1x1x1x1x4x4xf32> to vector<4x4xf32>
    %c12_419 = arith.constant 12 : index
    %c24_420 = arith.constant 24 : index
    %164 = vector.load %arg8[%c12_419, %c24_420] : memref<16x64xf32, #tpu.memory_space<vmem>>, vector<4x4xf32>
    tpu.vector_store %arg8[%c12_419, %c24_420], %163 {strides = array<i32>} : memref<16x64xf32, #tpu.memory_space<vmem>>, vector<4x4xf32>,
    %c0_421 = arith.constant 0 : index
    %c1_422 = arith.constant 1 : index
    %c3_423 = arith.constant 3 : index
    %c3_424 = arith.constant 3 : index
    %c0_425 = arith.constant 0 : index
    %c0_426 = arith.constant 0 : index
    %165 = vector.load %arg2[%c0_421, %c1_422, %c3_423, %c3_424, %c0_425, %c0_426] : memref<1x4x4x4x4x4xf32, #tpu.memory_space<vmem>>, vector<1x1x1x1x4x4xf32>
    %166 = vector.shape_cast %165 : vector<1x1x1x1x4x4xf32> to vector<4x4xf32>
    %c12_427 = arith.constant 12 : index
    %c28_428 = arith.constant 28 : index
    %167 = vector.load %arg8[%c12_427, %c28_428] : memref<16x64xf32, #tpu.memory_space<vmem>>, vector<4x4xf32>
    tpu.vector_store %arg8[%c12_427, %c28_428], %166 {strides = array<i32>} : memref<16x64xf32, #tpu.memory_space<vmem>>, vector<4x4xf32>,
    %c0_429 = arith.constant 0 : index
    %c2_430 = arith.constant 2 : index
    %c3_431 = arith.constant 3 : index
    %c0_432 = arith.constant 0 : index
    %c0_433 = arith.constant 0 : index
    %c0_434 = arith.constant 0 : index
    %168 = vector.load %arg2[%c0_429, %c2_430, %c3_431, %c0_432, %c0_433, %c0_434] : memref<1x4x4x4x4x4xf32, #tpu.memory_space<vmem>>, vector<1x1x1x1x4x4xf32>
    %169 = vector.shape_cast %168 : vector<1x1x1x1x4x4xf32> to vector<4x4xf32>
    %c12_435 = arith.constant 12 : index
    %c32_436 = arith.constant 32 : index
    %170 = vector.load %arg8[%c12_435, %c32_436] : memref<16x64xf32, #tpu.memory_space<vmem>>, vector<4x4xf32>
    tpu.vector_store %arg8[%c12_435, %c32_436], %169 {strides = array<i32>} : memref<16x64xf32, #tpu.memory_space<vmem>>, vector<4x4xf32>,
    %c0_437 = arith.constant 0 : index
    %c2_438 = arith.constant 2 : index
    %c3_439 = arith.constant 3 : index
    %c1_440 = arith.constant 1 : index
    %c0_441 = arith.constant 0 : index
    %c0_442 = arith.constant 0 : index
    %171 = vector.load %arg2[%c0_437, %c2_438, %c3_439, %c1_440, %c0_441, %c0_442] : memref<1x4x4x4x4x4xf32, #tpu.memory_space<vmem>>, vector<1x1x1x1x4x4xf32>
    %172 = vector.shape_cast %171 : vector<1x1x1x1x4x4xf32> to vector<4x4xf32>
    %c12_443 = arith.constant 12 : index
    %c36_444 = arith.constant 36 : index
    %173 = vector.load %arg8[%c12_443, %c36_444] : memref<16x64xf32, #tpu.memory_space<vmem>>, vector<4x4xf32>
    tpu.vector_store %arg8[%c12_443, %c36_444], %172 {strides = array<i32>} : memref<16x64xf32, #tpu.memory_space<vmem>>, vector<4x4xf32>,
    %c0_445 = arith.constant 0 : index
    %c2_446 = arith.constant 2 : index
    %c3_447 = arith.constant 3 : index
    %c2_448 = arith.constant 2 : index
    %c0_449 = arith.constant 0 : index
    %c0_450 = arith.constant 0 : index
    %174 = vector.load %arg2[%c0_445, %c2_446, %c3_447, %c2_448, %c0_449, %c0_450] : memref<1x4x4x4x4x4xf32, #tpu.memory_space<vmem>>, vector<1x1x1x1x4x4xf32>
    %175 = vector.shape_cast %174 : vector<1x1x1x1x4x4xf32> to vector<4x4xf32>
    %c12_451 = arith.constant 12 : index
    %c40_452 = arith.constant 40 : index
    %176 = vector.load %arg8[%c12_451, %c40_452] : memref<16x64xf32, #tpu.memory_space<vmem>>, vector<4x4xf32>
    tpu.vector_store %arg8[%c12_451, %c40_452], %175 {strides = array<i32>} : memref<16x64xf32, #tpu.memory_space<vmem>>, vector<4x4xf32>,
    %c0_453 = arith.constant 0 : index
    %c2_454 = arith.constant 2 : index
    %c3_455 = arith.constant 3 : index
    %c3_456 = arith.constant 3 : index
    %c0_457 = arith.constant 0 : index
    %c0_458 = arith.constant 0 : index
    %177 = vector.load %arg2[%c0_453, %c2_454, %c3_455, %c3_456, %c0_457, %c0_458] : memref<1x4x4x4x4x4xf32, #tpu.memory_space<vmem>>, vector<1x1x1x1x4x4xf32>
    %178 = vector.shape_cast %177 : vector<1x1x1x1x4x4xf32> to vector<4x4xf32>
    %c12_459 = arith.constant 12 : index
    %c44_460 = arith.constant 44 : index
    %179 = vector.load %arg8[%c12_459, %c44_460] : memref<16x64xf32, #tpu.memory_space<vmem>>, vector<4x4xf32>
    tpu.vector_store %arg8[%c12_459, %c44_460], %178 {strides = array<i32>} : memref<16x64xf32, #tpu.memory_space<vmem>>, vector<4x4xf32>,
    %c0_461 = arith.constant 0 : index
    %c3_462 = arith.constant 3 : index
    %c3_463 = arith.constant 3 : index
    %c0_464 = arith.constant 0 : index
    %c0_465 = arith.constant 0 : index
    %c0_466 = arith.constant 0 : index
    %180 = vector.load %arg2[%c0_461, %c3_462, %c3_463, %c0_464, %c0_465, %c0_466] : memref<1x4x4x4x4x4xf32, #tpu.memory_space<vmem>>, vector<1x1x1x1x4x4xf32>
    %181 = vector.shape_cast %180 : vector<1x1x1x1x4x4xf32> to vector<4x4xf32>
    %c12_467 = arith.constant 12 : index
    %c48_468 = arith.constant 48 : index
    %182 = vector.load %arg8[%c12_467, %c48_468] : memref<16x64xf32, #tpu.memory_space<vmem>>, vector<4x4xf32>
    tpu.vector_store %arg8[%c12_467, %c48_468], %181 {strides = array<i32>} : memref<16x64xf32, #tpu.memory_space<vmem>>, vector<4x4xf32>,
    %c0_469 = arith.constant 0 : index
    %c3_470 = arith.constant 3 : index
    %c3_471 = arith.constant 3 : index
    %c1_472 = arith.constant 1 : index
    %c0_473 = arith.constant 0 : index
    %c0_474 = arith.constant 0 : index
    %183 = vector.load %arg2[%c0_469, %c3_470, %c3_471, %c1_472, %c0_473, %c0_474] : memref<1x4x4x4x4x4xf32, #tpu.memory_space<vmem>>, vector<1x1x1x1x4x4xf32>
    %184 = vector.shape_cast %183 : vector<1x1x1x1x4x4xf32> to vector<4x4xf32>
    %c12_475 = arith.constant 12 : index
    %c52_476 = arith.constant 52 : index
    %185 = vector.load %arg8[%c12_475, %c52_476] : memref<16x64xf32, #tpu.memory_space<vmem>>, vector<4x4xf32>
    tpu.vector_store %arg8[%c12_475, %c52_476], %184 {strides = array<i32>} : memref<16x64xf32, #tpu.memory_space<vmem>>, vector<4x4xf32>,
    %c0_477 = arith.constant 0 : index
    %c3_478 = arith.constant 3 : index
    %c3_479 = arith.constant 3 : index
    %c2_480 = arith.constant 2 : index
    %c0_481 = arith.constant 0 : index
    %c0_482 = arith.constant 0 : index
    %186 = vector.load %arg2[%c0_477, %c3_478, %c3_479, %c2_480, %c0_481, %c0_482] : memref<1x4x4x4x4x4xf32, #tpu.memory_space<vmem>>, vector<1x1x1x1x4x4xf32>
    %187 = vector.shape_cast %186 : vector<1x1x1x1x4x4xf32> to vector<4x4xf32>
    %c12_483 = arith.constant 12 : index
    %c56_484 = arith.constant 56 : index
    %188 = vector.load %arg8[%c12_483, %c56_484] : memref<16x64xf32, #tpu.memory_space<vmem>>, vector<4x4xf32>
    tpu.vector_store %arg8[%c12_483, %c56_484], %187 {strides = array<i32>} : memref<16x64xf32, #tpu.memory_space<vmem>>, vector<4x4xf32>,
    %c0_485 = arith.constant 0 : index
    %c3_486 = arith.constant 3 : index
    %c3_487 = arith.constant 3 : index
    %c3_488 = arith.constant 3 : index
    %c0_489 = arith.constant 0 : index
    %c0_490 = arith.constant 0 : index
    %189 = vector.load %arg2[%c0_485, %c3_486, %c3_487, %c3_488, %c0_489, %c0_490] : memref<1x4x4x4x4x4xf32, #tpu.memory_space<vmem>>, vector<1x1x1x1x4x4xf32>
    %190 = vector.shape_cast %189 : vector<1x1x1x1x4x4xf32> to vector<4x4xf32>
    %c12_491 = arith.constant 12 : index
    %c60_492 = arith.constant 60 : index
    %191 = vector.load %arg8[%c12_491, %c60_492] : memref<16x64xf32, #tpu.memory_space<vmem>>, vector<4x4xf32>
    tpu.vector_store %arg8[%c12_491, %c60_492], %190 {strides = array<i32>} : memref<16x64xf32, #tpu.memory_space<vmem>>, vector<4x4xf32>,
    %c0_493 = arith.constant 0 : index
    %c0_494 = arith.constant 0 : index
    %192 = vector.load %arg8[%c0_493, %c0_494] : memref<16x64xf32, #tpu.memory_space<vmem>>, vector<16x64xf32>
    %c0_495 = arith.constant 0 : index
    %c0_496 = arith.constant 0 : index
    %193 = vector.load %arg3[%c0_495, %c0_496] : memref<64x128xf32, #tpu.memory_space<vmem>>, vector<64x128xf32>
    %cst = arith.constant dense<0.000000e+00> : vector<16x128xf32>
    %194 = tpu.matmul %192, %193, %cst {dimension_numbers = #tpu.dot_dimension_numbers<[1], [0], [0], [1], [0, 0, 1, 1], [], []>} : vector<16x64xf32>, vector<64x128xf32>, vector<16x128xf32> -> vector<16x128xf32>
    %c0_497 = arith.constant 0 : index
    %c0_498 = arith.constant 0 : index
    %195 = vector.load %arg4[%c0_497, %c0_498] : memref<1x128xf32, #tpu.memory_space<vmem>>, vector<1x128xf32>
    %196 = vector.broadcast %195 : vector<1x128xf32> to vector<16x128xf32>
    %197 = arith.addf %194, %196 : vector<16x128xf32>
    %cst_499 = arith.constant dense<0.000000e+00> : vector<16xf32>
    %198 = vector.multi_reduction <add>, %197, %cst_499 [1] : vector<16x128xf32> to vector<16xf32>
    %199 = vector.shape_cast %198 : vector<16xf32> to vector<16x1xf32>
    %cst_500 = arith.constant 3.125000e-02 : f32
    %200 = vector.broadcast %cst_500 : f32 to vector<16x1xf32>
    %201 = arith.mulf %199, %200 : vector<16x1xf32>
    %202 = vector.broadcast %201 : vector<16x1xf32> to vector<16x128xf32>
    %203 = arith.subf %197, %202 : vector<16x128xf32>
    %204 = tpu.iota {dimensions = array<i32: 1>} : vector<16x128xi32>
    %c32_i32 = arith.constant 32 : i32
    %205 = vector.broadcast %c32_i32 : i32 to vector<16x128xi32>
    %206 = arith.cmpi slt, %204, %205 : vector<16x128xi32>
    %cst_501 = arith.constant 0.000000e+00 : f32
    %207 = vector.broadcast %cst_501 : f32 to vector<16x128xf32>
    %208 = arith.select %206, %203, %207 : vector<16x128xi1>, vector<16x128xf32>
    %209 = arith.mulf %208, %208 : vector<16x128xf32>
    %cst_502 = arith.constant dense<0.000000e+00> : vector<16xf32>
    %210 = vector.multi_reduction <add>, %209, %cst_502 [1] : vector<16x128xf32> to vector<16xf32>
    %211 = vector.shape_cast %210 : vector<16xf32> to vector<16x1xf32>
    %cst_503 = arith.constant 3.125000e-02 : f32
    %212 = vector.broadcast %cst_503 : f32 to vector<16x1xf32>
    %213 = arith.mulf %211, %212 : vector<16x1xf32>
    %cst_504 = arith.constant 9.99999974E-6 : f32
    %214 = vector.broadcast %cst_504 : f32 to vector<16x1xf32>
    %215 = arith.addf %213, %214 : vector<16x1xf32>
    %216 = math.rsqrt %215 : vector<16x1xf32>
    %217 = vector.broadcast %216 : vector<16x1xf32> to vector<16x128xf32>
    %218 = arith.mulf %208, %217 : vector<16x128xf32>
    %c0_505 = arith.constant 0 : index
    %c0_506 = arith.constant 0 : index
    %219 = vector.load %arg5[%c0_505, %c0_506] : memref<1x128xf32, #tpu.memory_space<vmem>>, vector<1x128xf32>
    %220 = vector.broadcast %219 : vector<1x128xf32> to vector<16x128xf32>
    %221 = arith.mulf %218, %220 : vector<16x128xf32>
    %c0_507 = arith.constant 0 : index
    %c0_508 = arith.constant 0 : index
    %222 = vector.load %arg6[%c0_507, %c0_508] : memref<1x128xf32, #tpu.memory_space<vmem>>, vector<1x128xf32>
    %223 = vector.broadcast %222 : vector<1x128xf32> to vector<16x128xf32>
    %224 = arith.addf %221, %223 : vector<16x128xf32>
    %c0_509 = arith.constant 0 : index
    %c0_510 = arith.constant 0 : index
    %c0_511 = arith.constant 0 : index
    %225 = vector.load %arg7[%c0_509, %c0_510, %c0_511] : memref<1x16x128xf32, #tpu.memory_space<vmem>>, vector<1x16x128xf32>
    %226 = vector.shape_cast %225 : vector<1x16x128xf32> to vector<16x128xf32>
    %227 = vector.shape_cast %224 : vector<16x128xf32> to vector<1x16x128xf32>
    tpu.vector_store %arg7[%c0_509, %c0_510, %c0_511], %227 {strides = array<i32>} : memref<1x16x128xf32, #tpu.memory_space<vmem>>, vector<1x16x128xf32>,
    return
  }
  func.func @transform_0(%arg0: i32, %arg1: i32) -> (i32, i32, i32, i32, i32, i32) {
    %c0_i32 = arith.constant 0 : i32
    %c0_i32_0 = arith.constant 0 : i32
    %c0_i32_1 = arith.constant 0 : i32
    %c0_i32_2 = arith.constant 0 : i32
    %c0_i32_3 = arith.constant 0 : i32
    return %arg0, %c0_i32, %arg1, %c0_i32_0, %c0_i32_1, %c0_i32_2 : i32, i32, i32, i32, i32, i32
  }
  func.func @transform_1(%arg0: i32, %arg1: i32) -> (i32, i32) {
    %c0_i32 = arith.constant 0 : i32
    %c0_i32_0 = arith.constant 0 : i32
    %c0_i32_1 = arith.constant 0 : i32
    return %c0_i32, %c0_i32_0 : i32, i32
  }
  func.func @transform_2(%arg0: i32, %arg1: i32) -> (i32, i32) {
    %c0_i32 = arith.constant 0 : i32
    %c0_i32_0 = arith.constant 0 : i32
    %c0_i32_1 = arith.constant 0 : i32
    return %c0_i32, %c0_i32_0 : i32, i32
  }
  func.func @transform_3(%arg0: i32, %arg1: i32) -> (i32, i32) {
    %c0_i32 = arith.constant 0 : i32
    %c0_i32_0 = arith.constant 0 : i32
    %c0_i32_1 = arith.constant 0 : i32
    return %c0_i32, %c0_i32_0 : i32, i32
  }
  func.func @transform_4(%arg0: i32, %arg1: i32) -> (i32, i32) {
    %c0_i32 = arith.constant 0 : i32
    %c0_i32_0 = arith.constant 0 : i32
    %c0_i32_1 = arith.constant 0 : i32
    return %c0_i32, %c0_i32_0 : i32, i32
  }
  func.func @transform_5(%arg0: i32, %arg1: i32) -> (i32, i32, i32) {
    %c0_i32 = arith.constant 0 : i32
    %c0_i32_0 = arith.constant 0 : i32
    return %arg0, %arg1, %c0_i32 : i32, i32, i32
  }
}

</mosaic_0001>

<llo_original>
// kernel: mamba_patch_embedding.1
$region0: #{mamba_patch_embedding.1}
  #allocation0 [shape = 'u32[]', space=smem, size = 0x4, offset = 0x4, fixed_abs, tag = 'smem constant byte address 0x4 - core index']
  #allocation1 [shape = 'u32[144,128]{1,0:T(1,128)}', space=vmem, size = 0x12000, scoped, tag = 'internal scratch']
  #allocation2 [shape = 'f32[16,64]{1,0:T(8,128)}', space=vmem, size = 0x2000, scoped, tag = 'scratch operand']
  %s0 = inlined_call_operand.vmem [shape: f32[2,4,4,4,4,4], index: 0, kind: input, shape index: {}]
  %s1 = inlined_call_operand.vmem [shape: f32[64,128], index: 1, kind: input, shape index: {}]
  %s2 = inlined_call_operand.vmem [shape: f32[1,128], index: 2, kind: input, shape index: {}]
  %s3 = inlined_call_operand.vmem [shape: f32[1,128], index: 3, kind: input, shape index: {}]
  %s4 = inlined_call_operand.vmem [shape: f32[1,128], index: 4, kind: input, shape index: {}]
  %s5 = inlined_call_operand.hbm [shape: f32[2,16,128], index: 5, kind: output, shape index: {}]
  %s6 = sld [smem:[#allocation0]]
  $region53: #{mamba_patch_embedding.1} parent=0
    _
  %s8 = ssub.s32 1, %s6
  %s9 = scalar_select 0, %s8, %s6
  $region1: #{mamba_patch_embedding.1} parent=0
    #allocation3 [shape = 'u8[16384]{0}', space=vmem, size = 0x4000, scoped, tag = 'output window, operand 0']
    #allocation4 [shape = 's32[2]{0}', space=sflag, size = 0x8, scoped, tag = 'scoped memory for mamba_patch_embedding.1']
    %10 = vsyncpa [#allocation4], 0
    %s11 = scalar_lea.sflag [#allocation4], 1
    %12 = vsyncpa %s11, 0
    loop: start=0, step=1, limit=4
    $region2: #{mamba_patch_embedding.1} parent=1 // loop_pre_header
      _
    $region3: #{mamba_patch_embedding.1} parent=1 // loop_header
      %s14 = sphi 0, %s18
      %p15 = scmp.ge.s32.totalorder %s14, 4
      %s21 = sphi 0, %s33
      %s22 = sphi 0, %s29
      %s23 = sphi 0, %s21
      %s24 = sphi 0, %s22
      %s25 = sphi 0, %s23
      %s26 = sphi 0, %s24
      %s38 = sphi 0, %s40
      %s41 = sphi 0, %s38
      %s42 = sphi 0, %s41
      %s58 = sphi 0, %s42
      %s62 = sphi 0, %s62
      %s64 = sphi 0, %s62
      %s65 = sphi 0, %s64
      %s79 = sphi 0, %s65
      %s83 = sphi 0, %s83
      %s85 = sphi 0, %s83
      %s86 = sphi 0, %s85
      %s100 = sphi 0, %s86
      %s104 = sphi 0, %s104
      %s106 = sphi 0, %s104
      %s107 = sphi 0, %s106
      %s121 = sphi 0, %s107
      %s125 = sphi 0, %s125
      %s127 = sphi 0, %s125
      %s128 = sphi 0, %s127
      %s142 = sphi 0, %s128
      %s150 = sphi 0, %s152
      %s153 = sphi 0, %s150
      %s154 = sphi 0, %s153
      %s170 = sphi 0, %s154
    $region4: #{mamba_patch_embedding.1} parent=1 // loop_header_branch
      %17 = sbr.rel (%p15) target = $region8
    $region5: #{mamba_patch_embedding.1} parent=1 // loop_body
      %s19 = ssub.s32 %s14, 1
      %s20 = ssub.s32 %s14, 2
      %s27 = sadd.s32 1, %s22
      %p28 = scmp.ge.s32.totalorder %s27, 1
      %s29 = scalar_select %p28, 0, %s27
      %s30 = sadd.s32 1, %s21
      %s31 = scalar_select %p28, %s30, %s21
      %p32 = scmp.ge.s32.totalorder %s31, 2
      %s33 = scalar_select %p32, 0, %s31
      %s34 = ssub.s32 %s21, %s33
      %s35 = ssub.s32 %s22, %s29
      %s36 = sor.u32 %s34, %s35
      %p37 = scmp.eq.s32.totalorder %s36, 0
      %s39 = sadd.s32 %s38, 1
      %s40 = scalar_select %p37, %s38, %s39
      %p43 = pneg %p37
      %p44 = scmp.eq.s32.totalorder %s14, 1
      %p45 = por %p43, %p44
      %p46 = scmp.ne.s32.totalorder %s38, %s41
      %p47 = scmp.eq.s32.totalorder %s14, 0
      %p48 = por %p46, %p47
      %p49 = scmp.ne.s32.totalorder %s38, %s41
      %p50 = scmp.eq.s32.totalorder %s19, 1
      %p51 = por %p49, %p50
      %p52 = scmp.ne.s32.totalorder %s41, %s42
      %p53 = scmp.eq.s32.totalorder %s19, 0
      %p54 = por %p52, %p53
      %p55 = scmp.ne.s32.totalorder %s41, %s42
      %p56 = scmp.eq.s32.totalorder %s20, 1
      %p57 = por %p55, %p56
      %p59 = scmp.ne.s32.totalorder %s42, %s58
      %p60 = scmp.eq.s32.totalorder %s20, 0
      %p61 = por %p59, %p60
      %s63 = sadd.s32 %s62, 1
      %p66 = scmp.eq.s32.totalorder %s14, 1
      %p67 = scmp.ne.s32.totalorder %s62, %s64
      %p68 = scmp.eq.s32.totalorder %s14, 0
      %p69 = por %p67, %p68
      %p70 = scmp.ne.s32.totalorder %s62, %s64
      %p71 = scmp.eq.s32.totalorder %s19, 1
      %p72 = por %p70, %p71
      %p73 = scmp.ne.s32.totalorder %s64, %s65
      %p74 = scmp.eq.s32.totalorder %s19, 0
      %p75 = por %p73, %p74
      %p76 = scmp.ne.s32.totalorder %s64, %s65
      %p77 = scmp.eq.s32.totalorder %s20, 1
      %p78 = por %p76, %p77
      %p80 = scmp.ne.s32.totalorder %s65, %s79
      %p81 = scmp.eq.s32.totalorder %s20, 0
      %p82 = por %p80, %p81
      %s84 = sadd.s32 %s83, 1
      %p87 = scmp.eq.s32.totalorder %s14, 1
      %p88 = scmp.ne.s32.totalorder %s83, %s85
      %p89 = scmp.eq.s32.totalorder %s14, 0
      %p90 = por %p88, %p89
      %p91 = scmp.ne.s32.totalorder %s83, %s85
      %p92 = scmp.eq.s32.totalorder %s19, 1
      %p93 = por %p91, %p92
      %p94 = scmp.ne.s32.totalorder %s85, %s86
      %p95 = scmp.eq.s32.totalorder %s19, 0
      %p96 = por %p94, %p95
      %p97 = scmp.ne.s32.totalorder %s85, %s86
      %p98 = scmp.eq.s32.totalorder %s20, 1
      %p99 = por %p97, %p98
      %p101 = scmp.ne.s32.totalorder %s86, %s100
      %p102 = scmp.eq.s32.totalorder %s20, 0
      %p103 = por %p101, %p102
      %s105 = sadd.s32 %s104, 1
      %p108 = scmp.eq.s32.totalorder %s14, 1
      %p109 = scmp.ne.s32.totalorder %s104, %s106
      %p110 = scmp.eq.s32.totalorder %s14, 0
      %p111 = por %p109, %p110
      %p112 = scmp.ne.s32.totalorder %s104, %s106
      %p113 = scmp.eq.s32.totalorder %s19, 1
      %p114 = por %p112, %p113
      %p115 = scmp.ne.s32.totalorder %s106, %s107
      %p116 = scmp.eq.s32.totalorder %s19, 0
      %p117 = por %p115, %p116
      %p118 = scmp.ne.s32.totalorder %s106, %s107
      %p119 = scmp.eq.s32.totalorder %s20, 1
      %p120 = por %p118, %p119
      %p122 = scmp.ne.s32.totalorder %s107, %s121
      %p123 = scmp.eq.s32.totalorder %s20, 0
      %p124 = por %p122, %p123
      %s126 = sadd.s32 %s125, 1
      %p129 = scmp.eq.s32.totalorder %s14, 1
      %p130 = scmp.ne.s32.totalorder %s125, %s127
      %p131 = scmp.eq.s32.totalorder %s14, 0
      %p132 = por %p130, %p131
      %p133 = scmp.ne.s32.totalorder %s125, %s127
      %p134 = scmp.eq.s32.totalorder %s19, 1
      %p135 = por %p133, %p134
      %p136 = scmp.ne.s32.totalorder %s127, %s128
      %p137 = scmp.eq.s32.totalorder %s19, 0
      %p138 = por %p136, %p137
      %p139 = scmp.ne.s32.totalorder %s127, %s128
      %p140 = scmp.eq.s32.totalorder %s20, 1
      %p141 = por %p139, %p140
      %p143 = scmp.ne.s32.totalorder %s128, %s142
      %p144 = scmp.eq.s32.totalorder %s20, 0
      %p145 = por %p143, %p144
      %s146 = ssub.s32 %s21, %s33
      %s147 = ssub.s32 %s22, %s29
      %s148 = sor.u32 %s146, %s147
      %p149 = scmp.eq.s32.totalorder %s148, 0
      %s151 = sadd.s32 %s150, 1
      %s152 = scalar_select %p149, %s150, %s151
      %p155 = pneg %p149
      %p156 = scmp.eq.s32.totalorder %s14, 1
      %p157 = por %p155, %p156
      %p158 = scmp.ne.s32.totalorder %s150, %s153
      %p159 = scmp.eq.s32.totalorder %s14, 0
      %p160 = por %p158, %p159
      %p161 = scmp.ne.s32.totalorder %s150, %s153
      %p162 = scmp.eq.s32.totalorder %s19, 1
      %p163 = por %p161, %p162
      %p164 = scmp.ne.s32.totalorder %s153, %s154
      %p165 = scmp.eq.s32.totalorder %s19, 0
      %p166 = por %p164, %p165
      %p167 = scmp.ne.s32.totalorder %s153, %s154
      %p168 = scmp.eq.s32.totalorder %s20, 1
      %p169 = por %p167, %p168
      %p171 = scmp.ne.s32.totalorder %s154, %s170
      %p172 = scmp.eq.s32.totalorder %s20, 0
      %p173 = por %p171, %p172
      %p174 = scmp.le.s32.totalorder 1, %s14
      %p175 = scmp.lt.s32.totalorder %s14, 3
      %p176 = pnand %p174, %p175
      %p177 = pneg %p176
      // Predicated region
      $region9: #{mamba_patch_embedding.1} parent=5 // pred_check
        _
      $region10: #{mamba_patch_embedding.1} parent=5 // pred_check_branch
        %179 = sbr.rel (%p176) target = $region12
      $region11: #{mamba_patch_embedding.1} parent=5 // pred_region
        %s180 = ssub.s32 %s14, 1
        // Predicated region
        $region13: #{mamba_patch_embedding.1} parent=11 // pred_check
          %p181 = pneg %p75
        $region14: #{mamba_patch_embedding.1} parent=11 // pred_check_branch
          %183 = sbr.rel (%p181) target = $region16
        $region15: #{mamba_patch_embedding.1} parent=11 // pred_region
          _
        $region16: #{mamba_patch_embedding.1} parent=11 // pred_fallthru
          _
        // Predicated region
        $region17: #{mamba_patch_embedding.1} parent=11 // pred_check
          %p184 = pneg %p96
        $region18: #{mamba_patch_embedding.1} parent=11 // pred_check_branch
          %186 = sbr.rel (%p184) target = $region20
        $region19: #{mamba_patch_embedding.1} parent=11 // pred_region
          _
        $region20: #{mamba_patch_embedding.1} parent=11 // pred_fallthru
          _
        // Predicated region
        $region21: #{mamba_patch_embedding.1} parent=11 // pred_check
          %p187 = pneg %p117
        $region22: #{mamba_patch_embedding.1} parent=11 // pred_check_branch
          %189 = sbr.rel (%p187) target = $region24
        $region23: #{mamba_patch_embedding.1} parent=11 // pred_region
          _
        $region24: #{mamba_patch_embedding.1} parent=11 // pred_fallthru
          _
        // Predicated region
        $region25: #{mamba_patch_embedding.1} parent=11 // pred_check
          %p190 = pneg %p138
        $region26: #{mamba_patch_embedding.1} parent=11 // pred_check_branch
          %192 = sbr.rel (%p190) target = $region28
        $region27: #{mamba_patch_embedding.1} parent=11 // pred_region
          _
        $region28: #{mamba_patch_embedding.1} parent=11 // pred_fallthru
          _
      $region12: #{mamba_patch_embedding.1} parent=5 // pred_fallthru
        _
      %p193 = scmp.lt.s32.totalorder %s14, 2
      // Predicated region
      $region29: #{mamba_patch_embedding.1} parent=5 // pred_check
        %p194 = pneg %p193
      $region30: #{mamba_patch_embedding.1} parent=5 // pred_check_branch
        %196 = sbr.rel (%p194) target = $region32
      $region31: #{mamba_patch_embedding.1} parent=5 // pred_region
        // Predicated region
        $region33: #{mamba_patch_embedding.1} parent=31 // pred_check
          %p197 = pneg %p48
        $region34: #{mamba_patch_embedding.1} parent=31 // pred_check_branch
          %199 = sbr.rel (%p197) target = $region36
        $region35: #{mamba_patch_embedding.1} parent=31 // pred_region
          %s200 = smul.u32 4, %s22
          %p201 = scmp.lt.s32.totalorder %s21, 1
          %s202 = scalar_select %p201, %s21, 1
          %p203 = scmp.lt.s32.totalorder %s200, 3
          %s204 = scalar_select %p203, %s200, 3
          %s205 = smul.addr %s204, 4
          %s206 = smul.addr %s202, 64
          %s207 = sadd.s32 %s205, %s206
          %s208 = smul.addr %s207, 4
          %s209 = scalar_lea.vmem %s0, %s208
          %s210 = smul.u32 4, %s22
        $region36: #{mamba_patch_embedding.1} parent=31 // pred_fallthru
          _
      $region32: #{mamba_patch_embedding.1} parent=5 // pred_fallthru
        _
      %p211 = scmp.le.s32.totalorder 1, %s14
      %p212 = scmp.lt.s32.totalorder %s14, 3
      %p213 = pnand %p211, %p212
      %p214 = pneg %p213
      // Predicated region
      $region37: #{mamba_patch_embedding.1} parent=5 // pred_check
        _
      $region38: #{mamba_patch_embedding.1} parent=5 // pred_check_branch
        %216 = sbr.rel (%p213) target = $region40
      $region39: #{mamba_patch_embedding.1} parent=5 // pred_region
        %s217 = ssub.s32 %s14, 1
        %s218 = smul.u32 4, %s24
        %p219 = scmp.lt.s32.totalorder %s23, 1
        %s220 = scalar_select %p219, %s23, 1
        %p221 = scmp.lt.s32.totalorder %s218, 3
        %s222 = scalar_select %p221, %s218, 3
        %s223 = smul.addr %s222, 4
        %s224 = smul.addr %s220, 64
        %s225 = sadd.s32 %s223, %s224
        %s226 = smul.addr %s225, 4
        %s227 = scalar_lea.vmem %s0, %s226
        %p228 = pneg %p54
        %p229 = pneg %p51
        %p230 = pneg %p75
        %p231 = pneg %p72
        %p232 = pneg %p96
        %p233 = pneg %p93
        %p234 = pneg %p117
        %p235 = pneg %p114
        %p236 = pneg %p138
        %p237 = pneg %p135
        %p238 = pneg %p166
        %p239 = pneg %p163
        %s240 = sand.u32 %s153, 1
        %s241 = scalar_lea.sflag [#allocation4], %s240
        %s242 = sand.u32 %s153, 1
        %s243 = smul.addr %s242, 16
        %s244 = scalar_lea.vmem [#allocation3], %s243
        %s245 = smul.u32 4, %s24
        %p246 = scmp.lt.s32.totalorder %s23, 1
        %s247 = scalar_select %p246, %s23, 1
        %p248 = scmp.lt.s32.totalorder %s245, 3
        %s249 = scalar_select %p248, %s245, 3
        %s250 = smul.addr %s249, 4
        %s251 = smul.addr %s247, 64
        %s252 = sadd.s32 %s250, %s251
        %s253 = smul.addr %s252, 4
        %s254 = scalar_lea.vmem %s0, %s253
        %s255 = smul.u32 4, %s24
        %s256 = smul.u32 2, %s24
        %v257 = vld [vmem:[%s254] sm:$0xf]
        %vm258 = vcmask 27648
        %259 = vst.msk [vmem:[#allocation2] sm:$0xf] %vm258, %v257
        %s260 = scalar_lea.vmem %s254, 4
        %v261 = vld [vmem:[%s260] sm:$0xf]
        %263 = vrot.lane.b32.xlu0 %v261, 4
        %v264 = vpop.permute.xlu0 %263
        %vm266 = vcmask 60448
        %267 = vst.msk [vmem:[#allocation2] sm:$0xf] %vm266, %v264
        %s268 = scalar_lea.vmem %s254, 8
        %v269 = vld [vmem:[%s268] sm:$0xf]
        %271 = vrot.lane.b32.xlu0 %v269, 8
        %v272 = vpop.permute.xlu0 %271
        %vm274 = vcmask 93248
        %275 = vst.msk [vmem:[#allocation2] sm:$0xf] %vm274, %v272
        %s276 = scalar_lea.vmem %s254, 12
        %v277 = vld [vmem:[%s276] sm:$0xf]
        %279 = vrot.lane.b32.xlu0 %v277, 12
        %v280 = vpop.permute.xlu0 %279
        %vm282 = vcmask 126048
        %283 = vst.msk [vmem:[#allocation2] sm:$0xf] %vm282, %v280
        %s284 = scalar_lea.vmem %s254, 64
        %v285 = vld [vmem:[%s284] sm:$0xf]
        %287 = vrot.lane.b32.xlu0 %v285, 16
        %v288 = vpop.permute.xlu0 %287
        %vm290 = vcmask 158848
        %291 = vst.msk [vmem:[#allocation2] sm:$0xf] %vm290, %v288
        %s292 = scalar_lea.vmem %s254, 68
        %v293 = vld [vmem:[%s292] sm:$0xf]
        %295 = vrot.lane.b32.xlu0 %v293, 20
        %v296 = vpop.permute.xlu0 %295
        %vm298 = vcmask 191648
        %299 = vst.msk [vmem:[#allocation2] sm:$0xf] %vm298, %v296
        %s300 = scalar_lea.vmem %s254, 72
        %v301 = vld [vmem:[%s300] sm:$0xf]
        %303 = vrot.lane.b32.xlu0 %v301, 24
        %v304 = vpop.permute.xlu0 %303
        %vm306 = vcmask 224448
        %307 = vst.msk [vmem:[#allocation2] sm:$0xf] %vm306, %v304
        %s308 = scalar_lea.vmem %s254, 76
        %v309 = vld [vmem:[%s308] sm:$0xf]
        %311 = vrot.lane.b32.xlu0 %v309, 28
        %v312 = vpop.permute.xlu0 %311
        %vm314 = vcmask 257248
        %315 = vst.msk [vmem:[#allocation2] sm:$0xf] %vm314, %v312
        %s316 = scalar_lea.vmem %s254, 128
        %v317 = vld [vmem:[%s316] sm:$0xf]
        %319 = vrot.lane.b32.xlu0 %v317, 32
        %v320 = vpop.permute.xlu0 %319
        %vm322 = vcmask 290048
        %323 = vst.msk [vmem:[#allocation2] sm:$0xf] %vm322, %v320
        %s324 = scalar_lea.vmem %s254, 132
        %v325 = vld [vmem:[%s324] sm:$0xf]
        %327 = vrot.lane.b32.xlu0 %v325, 36
        %v328 = vpop.permute.xlu0 %327
        %vm330 = vcmask 322848
        %331 = vst.msk [vmem:[#allocation2] sm:$0xf] %vm330, %v328
        %s332 = scalar_lea.vmem %s254, 136
        %v333 = vld [vmem:[%s332] sm:$0xf]
        %335 = vrot.lane.b32.xlu0 %v333, 40
        %v336 = vpop.permute.xlu0 %335
        %vm338 = vcmask 355648
        %339 = vst.msk [vmem:[#allocation2] sm:$0xf] %vm338, %v336
        %s340 = scalar_lea.vmem %s254, 140
        %v341 = vld [vmem:[%s340] sm:$0xf]
        %343 = vrot.lane.b32.xlu0 %v341, 44
        %v344 = vpop.permute.xlu0 %343
        %vm346 = vcmask 388448
        %347 = vst.msk [vmem:[#allocation2] sm:$0xf] %vm346, %v344
        %s348 = scalar_lea.vmem %s254, 192
        %v349 = vld [vmem:[%s348] sm:$0xf]
        %351 = vrot.lane.b32.xlu0 %v349, 48
        %v352 = vpop.permute.xlu0 %351
        %vm354 = vcmask 421248
        %355 = vst.msk [vmem:[#allocation2] sm:$0xf] %vm354, %v352
        %s356 = scalar_lea.vmem %s254, 196
        %v357 = vld [vmem:[%s356] sm:$0xf]
        %359 = vrot.lane.b32.xlu0 %v357, 52
        %v360 = vpop.permute.xlu0 %359
        %vm362 = vcmask 454048
        %363 = vst.msk [vmem:[#allocation2] sm:$0xf] %vm362, %v360
        %s364 = scalar_lea.vmem %s254, 200
        %v365 = vld [vmem:[%s364] sm:$0xf]
        %367 = vrot.lane.b32.xlu0 %v365, 56
        %v368 = vpop.permute.xlu0 %367
        %vm370 = vcmask 486848
        %371 = vst.msk [vmem:[#allocation2] sm:$0xf] %vm370, %v368
        %s372 = scalar_lea.vmem %s254, 204
        %v373 = vld [vmem:[%s372] sm:$0xf]
        %375 = vrot.lane.b32.xlu0 %v373, 60
        %v376 = vpop.permute.xlu0 %375
        %vm378 = vcmask 519648
        %379 = vst.msk [vmem:[#allocation2] sm:$0xf] %vm378, %v376
        %s380 = scalar_lea.vmem %s254, 16
        %v381 = vld [vmem:[%s380] sm:$0xf]
        %382 = vst.msk [vmem:[#allocation2 + $0x4] sm:$0xf] %vm258, %v381
        %s383 = scalar_lea.vmem %s254, 20
        %v384 = vld [vmem:[%s383] sm:$0xf]
        %386 = vrot.lane.b32.xlu0 %v384, 4
        %v387 = vpop.permute.xlu0 %386
        %389 = vst.msk [vmem:[#allocation2 + $0x4] sm:$0xf] %vm266, %v387
        %s390 = scalar_lea.vmem %s254, 24
        %v391 = vld [vmem:[%s390] sm:$0xf]
        %393 = vrot.lane.b32.xlu0 %v391, 8
        %v394 = vpop.permute.xlu0 %393
        %396 = vst.msk [vmem:[#allocation2 + $0x4] sm:$0xf] %vm274, %v394
        %s397 = scalar_lea.vmem %s254, 28
        %v398 = vld [vmem:[%s397] sm:$0xf]
        %400 = vrot.lane.b32.xlu0 %v398, 12
        %v401 = vpop.permute.xlu0 %400
        %403 = vst.msk [vmem:[#allocation2 + $0x4] sm:$0xf] %vm282, %v401
        %s404 = scalar_lea.vmem %s254, 80
        %v405 = vld [vmem:[%s404] sm:$0xf]
        %407 = vrot.lane.b32.xlu0 %v405, 16
        %v408 = vpop.permute.xlu0 %407
        %410 = vst.msk [vmem:[#allocation2 + $0x4] sm:$0xf] %vm290, %v408
        %s411 = scalar_lea.vmem %s254, 84
        %v412 = vld [vmem:[%s411] sm:$0xf]
        %414 = vrot.lane.b32.xlu0 %v412, 20
        %v415 = vpop.permute.xlu0 %414
        %417 = vst.msk [vmem:[#allocation2 + $0x4] sm:$0xf] %vm298, %v415
        %s418 = scalar_lea.vmem %s254, 88
        %v419 = vld [vmem:[%s418] sm:$0xf]
        %421 = vrot.lane.b32.xlu0 %v419, 24
        %v422 = vpop.permute.xlu0 %421
        %424 = vst.msk [vmem:[#allocation2 + $0x4] sm:$0xf] %vm306, %v422
        %s425 = scalar_lea.vmem %s254, 92
        %v426 = vld [vmem:[%s425] sm:$0xf]
        %428 = vrot.lane.b32.xlu0 %v426, 28
        %v429 = vpop.permute.xlu0 %428
        %431 = vst.msk [vmem:[#allocation2 + $0x4] sm:$0xf] %vm314, %v429
        %s432 = scalar_lea.vmem %s254, 144
        %v433 = vld [vmem:[%s432] sm:$0xf]
        %435 = vrot.lane.b32.xlu0 %v433, 32
        %v436 = vpop.permute.xlu0 %435
        %438 = vst.msk [vmem:[#allocation2 + $0x4] sm:$0xf] %vm322, %v436
        %s439 = scalar_lea.vmem %s254, 148
        %v440 = vld [vmem:[%s439] sm:$0xf]
        %442 = vrot.lane.b32.xlu0 %v440, 36
        %v443 = vpop.permute.xlu0 %442
        %445 = vst.msk [vmem:[#allocation2 + $0x4] sm:$0xf] %vm330, %v443
        %s446 = scalar_lea.vmem %s254, 152
        %v447 = vld [vmem:[%s446] sm:$0xf]
        %449 = vrot.lane.b32.xlu0 %v447, 40
        %v450 = vpop.permute.xlu0 %449
        %452 = vst.msk [vmem:[#allocation2 + $0x4] sm:$0xf] %vm338, %v450
        %s453 = scalar_lea.vmem %s254, 156
        %v454 = vld [vmem:[%s453] sm:$0xf]
        %456 = vrot.lane.b32.xlu0 %v454, 44
        %v457 = vpop.permute.xlu0 %456
        %459 = vst.msk [vmem:[#allocation2 + $0x4] sm:$0xf] %vm346, %v457
        %s460 = scalar_lea.vmem %s254, 208
        %v461 = vld [vmem:[%s460] sm:$0xf]
        %463 = vrot.lane.b32.xlu0 %v461, 48
        %v464 = vpop.permute.xlu0 %463
        %466 = vst.msk [vmem:[#allocation2 + $0x4] sm:$0xf] %vm354, %v464
        %s467 = scalar_lea.vmem %s254, 212
        %v468 = vld [vmem:[%s467] sm:$0xf]
        %470 = vrot.lane.b32.xlu0 %v468, 52
        %v471 = vpop.permute.xlu0 %470
        %473 = vst.msk [vmem:[#allocation2 + $0x4] sm:$0xf] %vm362, %v471
        %s474 = scalar_lea.vmem %s254, 216
        %v475 = vld [vmem:[%s474] sm:$0xf]
        %477 = vrot.lane.b32.xlu0 %v475, 56
        %v478 = vpop.permute.xlu0 %477
        %480 = vst.msk [vmem:[#allocation2 + $0x4] sm:$0xf] %vm370, %v478
        %s481 = scalar_lea.vmem %s254, 220
        %v482 = vld [vmem:[%s481] sm:$0xf]
        %484 = vrot.lane.b32.xlu0 %v482, 60
        %v485 = vpop.permute.xlu0 %484
        %487 = vst.msk [vmem:[#allocation2 + $0x4] sm:$0xf] %vm378, %v485
        %s488 = scalar_lea.vmem %s254, 32
        %v489 = vld [vmem:[%s488] sm:$0xf]
        %490 = vst.msk [vmem:[#allocation2 + $0x8] sm:$0xf] %vm258, %v489
        %s491 = scalar_lea.vmem %s254, 36
        %v492 = vld [vmem:[%s491] sm:$0xf]
        %494 = vrot.lane.b32.xlu0 %v492, 4
        %v495 = vpop.permute.xlu0 %494
        %497 = vst.msk [vmem:[#allocation2 + $0x8] sm:$0xf] %vm266, %v495
        %s498 = scalar_lea.vmem %s254, 40
        %v499 = vld [vmem:[%s498] sm:$0xf]
        %501 = vrot.lane.b32.xlu0 %v499, 8
        %v502 = vpop.permute.xlu0 %501
        %504 = vst.msk [vmem:[#allocation2 + $0x8] sm:$0xf] %vm274, %v502
        %s505 = scalar_lea.vmem %s254, 44
        %v506 = vld [vmem:[%s505] sm:$0xf]
        %508 = vrot.lane.b32.xlu0 %v506, 12
        %v509 = vpop.permute.xlu0 %508
        %511 = vst.msk [vmem:[#allocation2 + $0x8] sm:$0xf] %vm282, %v509
        %s512 = scalar_lea.vmem %s254, 96
        %v513 = vld [vmem:[%s512] sm:$0xf]
        %515 = vrot.lane.b32.xlu0 %v513, 16
        %v516 = vpop.permute.xlu0 %515
        %518 = vst.msk [vmem:[#allocation2 + $0x8] sm:$0xf] %vm290, %v516
        %s519 = scalar_lea.vmem %s254, 100
        %v520 = vld [vmem:[%s519] sm:$0xf]
        %522 = vrot.lane.b32.xlu0 %v520, 20
        %v523 = vpop.permute.xlu0 %522
        %525 = vst.msk [vmem:[#allocation2 + $0x8] sm:$0xf] %vm298, %v523
        %s526 = scalar_lea.vmem %s254, 104
        %v527 = vld [vmem:[%s526] sm:$0xf]
        %529 = vrot.lane.b32.xlu0 %v527, 24
        %v530 = vpop.permute.xlu0 %529
        %532 = vst.msk [vmem:[#allocation2 + $0x8] sm:$0xf] %vm306, %v530
        %s533 = scalar_lea.vmem %s254, 108
        %v534 = vld [vmem:[%s533] sm:$0xf]
        %536 = vrot.lane.b32.xlu0 %v534, 28
        %v537 = vpop.permute.xlu0 %536
        %539 = vst.msk [vmem:[#allocation2 + $0x8] sm:$0xf] %vm314, %v537
        %s540 = scalar_lea.vmem %s254, 160
        %v541 = vld [vmem:[%s540] sm:$0xf]
        %543 = vrot.lane.b32.xlu0 %v541, 32
        %v544 = vpop.permute.xlu0 %543
        %546 = vst.msk [vmem:[#allocation2 + $0x8] sm:$0xf] %vm322, %v544
        %s547 = scalar_lea.vmem %s254, 164
        %v548 = vld [vmem:[%s547] sm:$0xf]
        %550 = vrot.lane.b32.xlu0 %v548, 36
        %v551 = vpop.permute.xlu0 %550
        %553 = vst.msk [vmem:[#allocation2 + $0x8] sm:$0xf] %vm330, %v551
        %s554 = scalar_lea.vmem %s254, 168
        %v555 = vld [vmem:[%s554] sm:$0xf]
        %557 = vrot.lane.b32.xlu0 %v555, 40
        %v558 = vpop.permute.xlu0 %557
        %560 = vst.msk [vmem:[#allocation2 + $0x8] sm:$0xf] %vm338, %v558
        %s561 = scalar_lea.vmem %s254, 172
        %v562 = vld [vmem:[%s561] sm:$0xf]
        %564 = vrot.lane.b32.xlu0 %v562, 44
        %v565 = vpop.permute.xlu0 %564
        %567 = vst.msk [vmem:[#allocation2 + $0x8] sm:$0xf] %vm346, %v565
        %s568 = scalar_lea.vmem %s254, 224
        %v569 = vld [vmem:[%s568] sm:$0xf]
        %571 = vrot.lane.b32.xlu0 %v569, 48
        %v572 = vpop.permute.xlu0 %571
        %574 = vst.msk [vmem:[#allocation2 + $0x8] sm:$0xf] %vm354, %v572
        %s575 = scalar_lea.vmem %s254, 228
        %v576 = vld [vmem:[%s575] sm:$0xf]
        %578 = vrot.lane.b32.xlu0 %v576, 52
        %v579 = vpop.permute.xlu0 %578
        %581 = vst.msk [vmem:[#allocation2 + $0x8] sm:$0xf] %vm362, %v579
        %s582 = scalar_lea.vmem %s254, 232
        %v583 = vld [vmem:[%s582] sm:$0xf]
        %585 = vrot.lane.b32.xlu0 %v583, 56
        %v586 = vpop.permute.xlu0 %585
        %588 = vst.msk [vmem:[#allocation2 + $0x8] sm:$0xf] %vm370, %v586
        %s589 = scalar_lea.vmem %s254, 236
        %v590 = vld [vmem:[%s589] sm:$0xf]
        %592 = vrot.lane.b32.xlu0 %v590, 60
        %v593 = vpop.permute.xlu0 %592
        %595 = vst.msk [vmem:[#allocation2 + $0x8] sm:$0xf] %vm378, %v593
        %s596 = scalar_lea.vmem %s254, 48
        %v597 = vld [vmem:[%s596] sm:$0xf]
        %598 = vst.msk [vmem:[#allocation2 + $0xc] sm:$0xf] %vm258, %v597
        %s599 = scalar_lea.vmem %s254, 52
        %v600 = vld [vmem:[%s599] sm:$0xf]
        %602 = vrot.lane.b32.xlu0 %v600, 4
        %v603 = vpop.permute.xlu0 %602
        %605 = vst.msk [vmem:[#allocation2 + $0xc] sm:$0xf] %vm266, %v603
        %s606 = scalar_lea.vmem %s254, 56
        %v607 = vld [vmem:[%s606] sm:$0xf]
        %609 = vrot.lane.b32.xlu0 %v607, 8
        %v610 = vpop.permute.xlu0 %609
        %612 = vst.msk [vmem:[#allocation2 + $0xc] sm:$0xf] %vm274, %v610
        %s613 = scalar_lea.vmem %s254, 60
        %v614 = vld [vmem:[%s613] sm:$0xf]
        %616 = vrot.lane.b32.xlu0 %v614, 12
        %v617 = vpop.permute.xlu0 %616
        %619 = vst.msk [vmem:[#allocation2 + $0xc] sm:$0xf] %vm282, %v617
        %s620 = scalar_lea.vmem %s254, 112
        %v621 = vld [vmem:[%s620] sm:$0xf]
        %623 = vrot.lane.b32.xlu0 %v621, 16
        %v624 = vpop.permute.xlu0 %623
        %626 = vst.msk [vmem:[#allocation2 + $0xc] sm:$0xf] %vm290, %v624
        %s627 = scalar_lea.vmem %s254, 116
        %v628 = vld [vmem:[%s627] sm:$0xf]
        %630 = vrot.lane.b32.xlu0 %v628, 20
        %v631 = vpop.permute.xlu0 %630
        %633 = vst.msk [vmem:[#allocation2 + $0xc] sm:$0xf] %vm298, %v631
        %s634 = scalar_lea.vmem %s254, 120
        %v635 = vld [vmem:[%s634] sm:$0xf]
        %637 = vrot.lane.b32.xlu0 %v635, 24
        %v638 = vpop.permute.xlu0 %637
        %640 = vst.msk [vmem:[#allocation2 + $0xc] sm:$0xf] %vm306, %v638
        %s641 = scalar_lea.vmem %s254, 124
        %v642 = vld [vmem:[%s641] sm:$0xf]
        %644 = vrot.lane.b32.xlu0 %v642, 28
        %v645 = vpop.permute.xlu0 %644
        %647 = vst.msk [vmem:[#allocation2 + $0xc] sm:$0xf] %vm314, %v645
        %s648 = scalar_lea.vmem %s254, 176
        %v649 = vld [vmem:[%s648] sm:$0xf]
        %651 = vrot.lane.b32.xlu0 %v649, 32
        %v652 = vpop.permute.xlu0 %651
        %654 = vst.msk [vmem:[#allocation2 + $0xc] sm:$0xf] %vm322, %v652
        %s655 = scalar_lea.vmem %s254, 180
        %v656 = vld [vmem:[%s655] sm:$0xf]
        %658 = vrot.lane.b32.xlu0 %v656, 36
        %v659 = vpop.permute.xlu0 %658
        %661 = vst.msk [vmem:[#allocation2 + $0xc] sm:$0xf] %vm330, %v659
        %s662 = scalar_lea.vmem %s254, 184
        %v663 = vld [vmem:[%s662] sm:$0xf]
        %665 = vrot.lane.b32.xlu0 %v663, 40
        %v666 = vpop.permute.xlu0 %665
        %668 = vst.msk [vmem:[#allocation2 + $0xc] sm:$0xf] %vm338, %v666
        %s669 = scalar_lea.vmem %s254, 188
        %v670 = vld [vmem:[%s669] sm:$0xf]
        %672 = vrot.lane.b32.xlu0 %v670, 44
        %v673 = vpop.permute.xlu0 %672
        %675 = vst.msk [vmem:[#allocation2 + $0xc] sm:$0xf] %vm346, %v673
        %s676 = scalar_lea.vmem %s254, 240
        %v677 = vld [vmem:[%s676] sm:$0xf]
        %679 = vrot.lane.b32.xlu0 %v677, 48
        %v680 = vpop.permute.xlu0 %679
        %682 = vst.msk [vmem:[#allocation2 + $0xc] sm:$0xf] %vm354, %v680
        %s683 = scalar_lea.vmem %s254, 244
        %v684 = vld [vmem:[%s683] sm:$0xf]
        %686 = vrot.lane.b32.xlu0 %v684, 52
        %v687 = vpop.permute.xlu0 %686
        %689 = vst.msk [vmem:[#allocation2 + $0xc] sm:$0xf] %vm362, %v687
        %s690 = scalar_lea.vmem %s254, 248
        %v691 = vld [vmem:[%s690] sm:$0xf]
        %693 = vrot.lane.b32.xlu0 %v691, 56
        %v694 = vpop.permute.xlu0 %693
        %696 = vst.msk [vmem:[#allocation2 + $0xc] sm:$0xf] %vm370, %v694
        %s697 = scalar_lea.vmem %s254, 252
        %v698 = vld [vmem:[%s697] sm:$0xf]
        %700 = vrot.lane.b32.xlu0 %v698, 60
        %v701 = vpop.permute.xlu0 %700
        %703 = vst.msk [vmem:[#allocation2 + $0xc] sm:$0xf] %vm378, %v701
        %v704 = vld [vmem:[#allocation2] sm:$0xff]
        %v705 = vld [vmem:[#allocation2 + $0x8] sm:$0xff]
        %v706 = vld [vmem:[%s1] sm:$0xff]
        %v707 = vld [vmem:[%s1 + $0x8] sm:$0xff]
        %v708 = vld [vmem:[%s1 + $0x10] sm:$0xff]
        %v709 = vld [vmem:[%s1 + $0x18] sm:$0xff]
        %v710 = vld [vmem:[%s1 + $0x20] sm:$0xff]
        %v711 = vld [vmem:[%s1 + $0x28] sm:$0xff]
        %v712 = vld [vmem:[%s1 + $0x30] sm:$0xff]
        %v713 = vld [vmem:[%s1 + $0x38] sm:$0xff]
        %v714 = vld [vmem:[%s2] sm:$0x1]
        %v716 = vlaneseq
        %v717 = vshrl.u32 %v716, 7
        %v718 = vsub.s32 0, %v717
        %v719 = vrot.slane %v714, %v718
        %vm721 = vcmask 523264
        %v723 = vsel %vm721, %v704, 0
        %v726 = vsel %vm721, %v705, 0
        %728 = vmatprep.subr.mxu0 0.0
        %729 = vmatpush1.msra.mxu0 %v706
        %730 = vmatprep.subr.mxu0 0.0
        %731 = vmatpush1.msra.mxu0 %v707
        %732 = vmatprep.subr.mxu0 0.0
        %733 = vmatpush1.msra.mxu0 %v708
        %734 = vmatprep.subr.mxu0 0.0
        %735 = vmatpush1.msra.mxu0 %v709
        %736 = vmatprep.subr.mxu0 0.0
        %737 = vmatpush1.msra.mxu0 %v710
        %738 = vmatprep.subr.mxu0 0.0
        %739 = vmatpush1.msra.mxu0 %v711
        %740 = vmatprep.subr.mxu0 0.0
        %741 = vmatpush1.msra.mxu0 %v712
        %742 = vmatprep.subr.mxu0 0.0
        %743 = vmatpush1.msra.mxu0 %v713
        %744 = vmatprep.subr.mxu0 0.0
        %745 = vmatpush1.msra.mxu0 0.0
        %746 = vmatprep.subr.mxu0 0.0
        %747 = vmatpush1.msra.mxu0 0.0
        %748 = vmatprep.subr.mxu0 0.0
        %749 = vmatpush1.msra.mxu0 0.0
        %750 = vmatprep.subr.mxu0 0.0
        %751 = vmatpush1.msra.mxu0 0.0
        %752 = vmatprep.subr.mxu0 0.0
        %753 = vmatpush1.msra.mxu0 0.0
        %754 = vmatprep.subr.mxu0 0.0
        %755 = vmatpush1.msra.mxu0 0.0
        %756 = vmatprep.subr.mxu0 0.0
        %757 = vmatpush1.msra.mxu0 0.0
        %758 = vmatprep.subr.mxu0 0.0
        %759 = vmatpush1.msra.mxu0 0.0
        %760 = vmatprep.subr.mxu0 0.0
        %761 = vmatpush1.msra.mxu0 0.0
        %762 = vmatprep.subr.mxu0 0.0
        %763 = vmatpush1.msra.mxu0 0.0
        %764 = vmatprep.subr.mxu0 0.0
        %765 = vmatpush1.msra.mxu0 0.0
        %766 = vmatprep.subr.mxu0 0.0
        %767 = vmatpush1.msra.mxu0 0.0
        %768 = vmatprep.subr.mxu0 0.0
        %769 = vmatpush1.msra.mxu0 0.0
        %770 = vmatprep.subr.mxu0 0.0
        %771 = vmatpush1.msra.mxu0 0.0
        %772 = vmatprep.subr.mxu0 0.0
        %773 = vmatpush1.msra.mxu0 0.0
        %774 = vmatprep.subr.mxu0 0.0
        %775 = vmatpush1.msra.mxu0 0.0
        %776 = vmatprep.subr.mxu0 0.0
        %777 = vmatpush1.msra.mxu0 0.0
        %778 = vmatprep.subr.mxu0 0.0
        %779 = vmatpush1.msra.mxu0 0.0
        %780 = vmatprep.subr.mxu0 0.0
        %781 = vmatpush1.msra.mxu0 0.0
        %782 = vmatprep.subr.mxu0 0.0
        %783 = vmatpush1.msra.mxu0 0.0
        %784 = vmatprep.subr.mxu0 0.0
        %785 = vmatpush1.msra.mxu0 0.0
        %786 = vmatprep.subr.mxu0 0.0
        %787 = vmatpush1.msra.mxu0 0.0
        %788 = vmatprep.subr.mxu0 0.0
        %789 = vmatpush1.msra.mxu0 0.0
        %790 = vmatprep.subr.mxu0 0.0
        %791 = vmatpush1.msra.mxu0 0.0
        %792 = vmatprep.mubr.f32.mxu0 0.0
        %793 = vmatmul.mubr.f32.gmra.mrb[0].mxu0 %v723
        %v794 = vpop.f32.mrb[0].mxu0
        %v795 = vadd.f32 %v719, %v794
        %v796 = vpop.f32.mrb[0].mxu0
        %797 = vmatprep.mubr.f32.mxu0 0.0
        %798 = vmatmul.mubr.f32.gmra.mrb[0].mxu0 %v726
        %v799 = vpop.f32.mrb[0].mxu0
        %v800 = vadd.f32 %v719, %v799
        %v801 = vpop.f32.mrb[0].mxu0
        %802 = vdwg.mxu0
        %803 = vadd.xlane.f32.xlu0 %v795
        %v804 = vpop.xlane.xlu0 %803
        %805 = vadd.xlane.f32.xlu0 %v800
        %v806 = vpop.xlane.xlu0 %805
        %v807 = vmul.f32 %v804, 0.03125
        %v808 = vmul.f32 %v806, 0.03125
        %v809 = vsub.f32 %v795, %v807
        %v810 = vsub.f32 %v800, %v808
        %v811 = vlaneseq
        %v812 = vand.u32 %v811, 127
        %vm813 = vcmp.lt.s32.totalorder %v812, 32
        %v814 = vsel %vm813, %v809, 0.0
        %v815 = vsel %vm813, %v810, 0.0
        %v816 = vmul.f32 %v814, %v814
        %v817 = vmul.f32 %v815, %v815
        %818 = vadd.xlane.f32.xlu0 %v816
        %v819 = vpop.xlane.xlu0 %818
        %820 = vadd.xlane.f32.xlu0 %v817
        %v821 = vpop.xlane.xlu0 %820
        %v822 = vmul.f32 %v819, 0.03125
        %v823 = vmul.f32 %v821, 0.03125
        %v824 = vadd.f32 %v822, 1e-05
        %v825 = vadd.f32 %v823, 1e-05
        %v826 = vrsqrt.pop %v824
        %v827 = vrsqrt.pop %v825
        %v828 = vmul.f32 %v814, %v826
        %v829 = vmul.f32 %v815, %v827
        %v830 = vld [vmem:[%s3] sm:$0x1]
        %v832 = vlaneseq
        %v833 = vshrl.u32 %v832, 7
        %v834 = vsub.s32 0, %v833
        %v835 = vrot.slane %v830, %v834
        %v837 = vmul.f32 %v828, %v835
        %v838 = vmul.f32 %v829, %v835
        %v839 = vld [vmem:[%s4] sm:$0x1]
        %v841 = vlaneseq
        %v842 = vshrl.u32 %v841, 7
        %v843 = vsub.s32 0, %v842
        %v844 = vrot.slane %v839, %v843
        %v846 = vadd.f32 %v837, %v844
        %v847 = vadd.f32 %v838, %v844
        %848 = vst [vmem:[%s244] sm:$0xff] %v846
        %849 = vst [vmem:[%s244 + $0x8] sm:$0xff] %v847
        %s850 = sand.u32 %s153, 1
        %s851 = scalar_lea.sflag [#allocation4], %s850
        %s852 = sand.u32 %s153, 1
        %s853 = smul.addr %s852, 16
        %s854 = scalar_lea.vmem [#allocation3], %s853
        // Predicated region
        $region41: #{mamba_patch_embedding.1} parent=39 // pred_check
          %p855 = pneg %p163
        $region42: #{mamba_patch_embedding.1} parent=39 // pred_check_branch
          %857 = sbr.rel (%p855) target = $region44
        $region43: #{mamba_patch_embedding.1} parent=39 // pred_region
          %s858 = smul.u32 2, %s24
          %s860 = ssub.s32 256, 256
          %861 = vsyncadd %s851, %s860
          %s862 = smul.addr %s23, 2
          %s863 = sadd.s32 %s858, %s862
          %s864 = smul.addr %s863, 128
          %s865 = scalar_lea.hbm %s5, %s864
          %s866 = sshll.u32 %s854, 4
          %s867 = int_to_ptr.vmem [resolvable:$true] %s866
          %872 = dma.vmem_to_hbm [thread:$0]  %s867, 256, %s865, %s851, 128, 128, 8
        $region44: #{mamba_patch_embedding.1} parent=39 // pred_fallthru
          _
      $region40: #{mamba_patch_embedding.1} parent=5 // pred_fallthru
        _
      %p873 = scmp.le.s32.totalorder 2, %s14
      // Predicated region
      $region45: #{mamba_patch_embedding.1} parent=5 // pred_check
        %p874 = pneg %p873
      $region46: #{mamba_patch_embedding.1} parent=5 // pred_check_branch
        %876 = sbr.rel (%p874) target = $region48
      $region47: #{mamba_patch_embedding.1} parent=5 // pred_region
        %s877 = ssub.s32 %s14, 2
        // Predicated region
        $region49: #{mamba_patch_embedding.1} parent=47 // pred_check
          %p878 = pneg %p169
        $region50: #{mamba_patch_embedding.1} parent=47 // pred_check_branch
          %880 = sbr.rel (%p878) target = $region52
        $region51: #{mamba_patch_embedding.1} parent=47 // pred_region
          %s881 = sand.u32 %s154, 1
          %s882 = scalar_lea.sflag [#allocation4], %s881
          %s883 = sand.u32 %s154, 1
          %s884 = smul.addr %s883, 16
          %s885 = scalar_lea.vmem [#allocation3], %s884
          %886 = dma.done %s882, 256
        $region52: #{mamba_patch_embedding.1} parent=47 // pred_fallthru
          _
      $region48: #{mamba_patch_embedding.1} parent=5 // pred_fallthru
        _
    $region6: #{mamba_patch_embedding.1} parent=1 // loop_footer
      %s18 = sadd.s32 1, %s14
    $region7: #{mamba_patch_embedding.1} parent=1 // loop_footer_branch
      %13 = sbr.rel target = $region3
    $region8: #{mamba_patch_embedding.1} parent=1 // loop_exit
      _
    %887 = vsyncpa [#allocation4], 1
    %s888 = scalar_lea.sflag [#allocation4], 1
    %889 = vsyncpa %s888, 1

</llo_original>
